<compile_context>
chip_gen: v7x
topology: tpu7x:2x2x1
jax: 0.10.0
libtpu: 0.0.40
codegen_flags: <defaults>
</compile_context>

<pallas_src>
import functools

import jax
import jax.numpy as jnp
from jax.experimental import pallas as pl
from jax.experimental.pallas import tpu as pltpu

N_CHANNELS = 100      # out_channels of each conv (as in the module)
CP = 128              # channels padded to the 128-lane grain
KS_MAX = 5            # largest conv kernel width (all branches padded to this)
NC = 3 * CP           # fused output channels (3 branches x 128)
OUT_PAD = 128         # lane-padded output width
SUB = 8               # sublane grain
LANE = 128            # lane grain


def _round_up(x, m):
    return (x + m - 1) // m * m


def _convnet_kernel(L, Tp, D, Dp, x_ref, w_ref, b_ref, wlin_ref, blin_ref,
                    out_ref, xw_ref):
    # x_ref   : (B_TILE, Tq, D)        bf16 activations (Tq = Tp + 8, zero padded)
    # w_ref   : (5*Dp, 3*128)          bf16 fused conv weights (zero padded)
    # b_ref   : (1, 3*128)             f32 fused conv bias
    # wlin_ref: (1, 3*128)             f32 linear weight (split per branch, zero padded)
    # blin_ref: (1, 1)                 f32 linear bias (SMEM scalar)
    # out_ref : (B_TILE, 128)          f32; col0 = p, col1 = 1-p, rest 0
    # xw_ref  : (B_TILE*Tp, 5*Dp)      bf16 scratch for the im2col rows
    bt = out_ref.shape[0]
    nc = w_ref.shape[1]
    m = bt * Tp

    # Build the im2col rows in VMEM: row (b, t) = [X[b,t], X[b,t+1], ..., X[b,t+4]],
    # each window-offset block starting at a 128-aligned lane (k*Dp), so the stores
    # are plain masked stores with no lane relayout. Zero the scratch first so the
    # pad lanes (and any stale VMEM) are exact zeros.
    xw_ref[...] = jnp.zeros_like(xw_ref)
    for k in range(KS_MAX):
        xw_ref[:, k * Dp:k * Dp + D] = x_ref[:, k:k + Tp, :].reshape(m, D)

    # Single fused MXU dot (K = 5*Dp), f32 accumulation; bias + ReLU.
    acc = jnp.dot(xw_ref[...], w_ref[...], preferred_element_type=jnp.float32)
    acc = jnp.maximum(acc + b_ref[...], 0.0).reshape(bt, Tp, nc)

    # Mask window rows invalid for each branch; validity is static in L:
    #   ks=3 -> L-2 valid rows, ks=4 -> L-3, ks=5 -> L-4.
    # 0 is a safe fill because every kept value is >= 0 after ReLU.
    t_idx = jax.lax.broadcasted_iota(jnp.int32, (Tp, nc), 0)
    c_idx = jax.lax.broadcasted_iota(jnp.int32, (Tp, nc), 1)
    vcount = jnp.where(c_idx < CP, L - 2, jnp.where(c_idx < 2 * CP, L - 3, L - 4))
    acc = jnp.where((t_idx < vcount)[None, :, :], acc, 0.0)

    feats = jnp.max(acc, axis=1)                                   # global max-pool -> (bt, nc)
    logits = jnp.sum(feats * wlin_ref[...], axis=1, keepdims=True) + blin_ref[0, 0]
    p = jax.nn.sigmoid(logits)                                     # (bt, 1)

    col = jax.lax.broadcasted_iota(jnp.int32, (bt, OUT_PAD), 1)
    out_ref[...] = jnp.where(col == 0, p, jnp.where(col == 1, 1.0 - p, 0.0))


def _pack_params(params, D, Dp):
    """Zero-pad channels 100->128, kernel widths ->5, D->Dp, build the fused weight."""
    w3, b3, w4, b4, w5, b5, wlin, blin = params

    def pack_w(w, ks):
        wp = jnp.zeros((KS_MAX, Dp, CP), jnp.float32)
        wp = wp.at[:ks, :D, :N_CHANNELS].set(w)
        return wp.reshape(KS_MAX * Dp, CP)

    def pack_vec(v):
        return jnp.pad(v.reshape(1, N_CHANNELS), ((0, 0), (0, CP - N_CHANNELS)))

    W = jnp.concatenate([pack_w(w3, 3), pack_w(w4, 4), pack_w(w5, 5)], axis=1)   # (5*Dp, 384)
    b = jnp.concatenate([pack_vec(b3), pack_vec(b4), pack_vec(b5)], axis=1)      # (1, 384)
    wl = jnp.concatenate([pack_vec(wlin[:, :N_CHANNELS]),
                          pack_vec(wlin[:, N_CHANNELS:2 * N_CHANNELS]),
                          pack_vec(wlin[:, 2 * N_CHANNELS:3 * N_CHANNELS])], axis=1)
    # bf16 conv weights are intentional (MXU operands); tolerance vs f32 is accepted.
    return (W.astype(jnp.bfloat16), b.astype(jnp.float32),
            wl.astype(jnp.float32), blin.reshape(1, 1).astype(jnp.float32))


def convnet_classifier(text, vecs, params):
    """text: (L, B) int32 token ids; vecs: (V, D) embedding table."""
    L, B = text.shape
    if L < 5:   # static-shape equivalent of `while text.size(0) < 5: cat ones`
        pad = jnp.ones((5 - L, B), dtype=text.dtype)
        text = jnp.concatenate([text, pad], axis=0)
        L = 5
    D = vecs.shape[1]
    Dp = _round_up(D, LANE)
    KDp = KS_MAX * Dp

    # Embedding gather in bf16, directly in (B, L, D) order: transpose the small
    # int32 id matrix, not the embedded tensor; no f32 intermediate.
    vecs_bf = vecs if vecs.dtype == jnp.bfloat16 else vecs.astype(jnp.bfloat16)
    X = vecs_bf[text.T]                                # (B, L, D) bf16

    T = L - 2                          # ks=3 window count (max over the 3 branches)
    Tp = _round_up(T, SUB)             # sublane-aligned window rows
    Tq = Tp + SUB                      # rows the ks=5 window may touch, 8-aligned
    Bp0 = _round_up(B, SUB)

    # ---- generation-aware VMEM budget / tile selection -------------------------
    try:
        vmem_cap = int(pltpu.get_tpu_info().vmem_capacity_bytes)
    except Exception:
        vmem_cap = 64 * 1024 * 1024                    # conservative (v7x per-core)
    vmem_limit = (vmem_cap * 3) // 4                   # ~96 MiB on v5e/v6e, ~48 MiB on v7x

    per_row = (2 * Tq * D * 2          # X tile, bf16, double-buffered
               + Tp * KDp * 2          # im2col scratch rows, bf16
               + 2 * Tp * NC * 4       # f32 matmul acc + mask/select temporary
               + 2 * OUT_PAD * 4)      # output tile, f32, double-buffered
    fixed = (2 * KDp * NC * 2          # resident fused weight (count 2 buffers)
             + 4 * SUB * NC * 4        # small (1, NC) operands padded to (8, NC)
             + 2 * 1024 * 1024)        # headroom for compiler temporaries

    bt_budget = (vmem_limit - fixed) // per_row
    bt_budget = max(SUB, min(1024, (bt_budget // SUB) * SUB))
    B_TILE = min(bt_budget, Bp0)
    if Bp0 >= 2 * SUB:                 # >= 2 grid steps so v7x's 2 TensorCores both work
        B_TILE = min(B_TILE, max(SUB, (Bp0 // 2) // SUB * SUB))
    Bp = _round_up(Bp0, B_TILE)
    # Make sure the declared limit covers the chosen tile.
    vmem_limit = int(max(vmem_limit, min(vmem_cap, fixed + B_TILE * per_row)))

    # Zero-pad batch/time; padded time rows hit zero-padded weight positions or are
    # masked out in the kernel, so 0 is exact (and never NaN).
    Xp = jnp.pad(X, ((0, Bp - B), (0, Tq - L), (0, 0)))

    W, b, wl, bl = _pack_params(params, D, Dp)

    grid = (Bp // B_TILE,)
    out = pl.pallas_call(
        functools.partial(_convnet_kernel, L, Tp, D, Dp),
        out_shape=jax.ShapeDtypeStruct((Bp, OUT_PAD), jnp.float32),
        grid=grid,
        in_specs=[
            pl.BlockSpec((B_TILE, Tq, D), lambda i: (i, 0, 0)),      # activations (bf16, pipelined)
            pl.BlockSpec((KDp, NC), lambda i: (0, 0)),               # fused conv weight (resident)
            pl.BlockSpec((1, NC), lambda i: (0, 0)),                 # fused conv bias
            pl.BlockSpec((1, NC), lambda i: (0, 0)),                 # linear weight (split/padded)
            pl.BlockSpec(memory_space=pltpu.MemorySpace.SMEM),       # linear bias scalar
        ],
        out_specs=pl.BlockSpec((B_TILE, OUT_PAD), lambda i: (i, 0)),
        scratch_shapes=[pltpu.VMEM((B_TILE * Tp, KDp), jnp.bfloat16)],
        compiler_params=pltpu.CompilerParams(
            dimension_semantics=("parallel",),
            vmem_limit_bytes=vmem_limit),
    )(Xp, W, b, wl, bl)

    # TODO(synk): Dropout2d (training=True path) not implemented; this is the eval forward.
    return out[:B, :2]                                               # [p, 1-p]


if __name__ == "__main__":
    key = jax.random.PRNGKey(0)
    ks = jax.random.split(key, 10)
    V, D = 50, 32          # vocab size, n_comps (embedding dim)
    L, B = 8, 2            # sent_length, batch_size

    vecs = jax.random.normal(ks[0], (V, D), jnp.float32)
    text = jax.random.randint(ks[1], (L, B), 0, V, dtype=jnp.int32)

    def conv_w(k, ksz):
        # PyTorch conv weight (C, 1, ksz, D) stored as (ksz, D, C)
        return 0.1 * jax.random.normal(k, (ksz, D, N_CHANNELS), jnp.float32)

    w3 = conv_w(ks[2], 3); b3 = 0.1 * jax.random.normal(ks[3], (1, N_CHANNELS), jnp.float32)
    w4 = conv_w(ks[4], 4); b4 = 0.1 * jax.random.normal(ks[5], (1, N_CHANNELS), jnp.float32)
    w5 = conv_w(ks[6], 5); b5 = 0.1 * jax.random.normal(ks[7], (1, N_CHANNELS), jnp.float32)
    wlin = 0.1 * jax.random.normal(ks[8], (1, 3 * N_CHANNELS), jnp.float32)  # nn.Linear(300,1).weight
    blin = 0.1 * jax.random.normal(ks[9], (1, 1), jnp.float32)               # nn.Linear(300,1).bias

    params = (w3, b3, w4, b4, w5, b5, wlin, blin)
    vecs_bf = vecs.astype(jnp.bfloat16)   # cast the embedding table to bf16 once
    fwd = jax.jit(lambda t: convnet_classifier(t, vecs_bf, params))
    out = fwd(text)
    jax.block_until_ready(out)
    assert out.shape == (B, 2)

    # pure-JAX f32 reference check (kernel uses bf16 MXU operands -> loose tolerance)
    def ref(text):
        X = vecs[text.reshape(-1)].reshape(L, B, D).transpose(1, 0, 2)
        feats = []
        for (w, bb, ksz) in ((w3, b3, 3), (w4, b4, 4), (w5, b5, 5)):
            T = L - ksz + 1
            acc = jnp.zeros((B, T, N_CHANNELS), jnp.float32)
            for k in range(ksz):
                acc = acc + jnp.einsum('btd,dc->btc', X[:, k:k + T, :], w[k])
            acc = jnp.maximum(acc + bb.reshape(1, 1, -1), 0.0)
            feats.append(jnp.max(acc, axis=1))
        feats = jnp.concatenate(feats, axis=1)
        p = jax.nn.sigmoid(feats @ wlin.T + blin)
        return jnp.concatenate([p, 1.0 - p], axis=1)

    assert jnp.allclose(out, ref(text), atol=2e-2), "kernel/reference mismatch"
    print("KERNEL_OK")
</pallas_src>

<mosaic_0001>
module attributes {stable_mosaic.version = 11 : i64} {
  func.func @_convnet_kernel(%arg0: i32, %arg1: memref<8x16x32xbf16, #tpu.memory_space<vmem>>, %arg2: memref<640x384xbf16, #tpu.memory_space<vmem>>, %arg3: memref<1x384xf32, #tpu.memory_space<vmem>>, %arg4: memref<1x384xf32, #tpu.memory_space<vmem>>, %arg5: memref<1x1xf32, #tpu.memory_space<smem>>, %arg6: memref<8x128xf32, #tpu.memory_space<vmem>>, %arg7: memref<64x640xbf16, #tpu.memory_space<vmem>>) attributes {dimension_semantics = [#tpu.dimension_semantics<parallel>], iteration_bounds = array<i64: 1>, scalar_prefetch = 0 : i64, scratch_operands = 1 : i64, tpu.core_type = #tpu.core_type<tc>, window_params = [{transform_indices = @transform_0, window_bounds = array<i64: 8, 16, 32>}, {pipeline_mode = #tpu.pipeline_mode<synchronous>, transform_indices = @transform_1, window_bounds = array<i64: 640, 384>}, {pipeline_mode = #tpu.pipeline_mode<synchronous>, transform_indices = @transform_2, window_bounds = array<i64: 1, 384>}, {pipeline_mode = #tpu.pipeline_mode<synchronous>, transform_indices = @transform_3, window_bounds = array<i64: 1, 384>}, {transform_indices = @transform_4, window_bounds = array<i64: 1, 1>}, {transform_indices = @transform_5, window_bounds = array<i64: 8, 128>}]} {
    %cst = arith.constant 0.000000e+00 : bf16
    %0 = vector.broadcast %cst : bf16 to vector<64x640xbf16>
    %c0 = arith.constant 0 : index
    %c0_0 = arith.constant 0 : index
    %1 = vector.load %arg7[%c0, %c0_0] : memref<64x640xbf16, #tpu.memory_space<vmem>>, vector<64x640xbf16>
    tpu.vector_store %arg7[%c0, %c0_0], %0 {strides = array<i32>} : memref<64x640xbf16, #tpu.memory_space<vmem>>, vector<64x640xbf16>,
    %c0_1 = arith.constant 0 : index
    %c0_2 = arith.constant 0 : index
    %c0_3 = arith.constant 0 : index
    %2 = vector.load %arg1[%c0_1, %c0_2, %c0_3] : memref<8x16x32xbf16, #tpu.memory_space<vmem>>, vector<8x8x32xbf16>
    %3 = vector.shape_cast %2 : vector<8x8x32xbf16> to vector<64x32xbf16>
    %c0_4 = arith.constant 0 : index
    %c0_5 = arith.constant 0 : index
    %4 = vector.load %arg7[%c0_4, %c0_5] : memref<64x640xbf16, #tpu.memory_space<vmem>>, vector<64x32xbf16>
    tpu.vector_store %arg7[%c0_4, %c0_5], %3 {strides = array<i32>} : memref<64x640xbf16, #tpu.memory_space<vmem>>, vector<64x32xbf16>,
    %c0_6 = arith.constant 0 : index
    %c1 = arith.constant 1 : index
    %c0_7 = arith.constant 0 : index
    %5 = vector.load %arg1[%c0_6, %c1, %c0_7] : memref<8x16x32xbf16, #tpu.memory_space<vmem>>, vector<8x8x32xbf16>
    %6 = vector.shape_cast %5 : vector<8x8x32xbf16> to vector<64x32xbf16>
    %c0_8 = arith.constant 0 : index
    %c128 = arith.constant 128 : index
    %7 = vector.load %arg7[%c0_8, %c128] : memref<64x640xbf16, #tpu.memory_space<vmem>>, vector<64x32xbf16>
    tpu.vector_store %arg7[%c0_8, %c128], %6 {strides = array<i32>} : memref<64x640xbf16, #tpu.memory_space<vmem>>, vector<64x32xbf16>,
    %c0_9 = arith.constant 0 : index
    %c2 = arith.constant 2 : index
    %c0_10 = arith.constant 0 : index
    %8 = vector.load %arg1[%c0_9, %c2, %c0_10] : memref<8x16x32xbf16, #tpu.memory_space<vmem>>, vector<8x8x32xbf16>
    %9 = vector.shape_cast %8 : vector<8x8x32xbf16> to vector<64x32xbf16>
    %c0_11 = arith.constant 0 : index
    %c256 = arith.constant 256 : index
    %10 = vector.load %arg7[%c0_11, %c256] : memref<64x640xbf16, #tpu.memory_space<vmem>>, vector<64x32xbf16>
    tpu.vector_store %arg7[%c0_11, %c256], %9 {strides = array<i32>} : memref<64x640xbf16, #tpu.memory_space<vmem>>, vector<64x32xbf16>,
    %c0_12 = arith.constant 0 : index
    %c3 = arith.constant 3 : index
    %c0_13 = arith.constant 0 : index
    %11 = vector.load %arg1[%c0_12, %c3, %c0_13] : memref<8x16x32xbf16, #tpu.memory_space<vmem>>, vector<8x8x32xbf16>
    %12 = vector.shape_cast %11 : vector<8x8x32xbf16> to vector<64x32xbf16>
    %c0_14 = arith.constant 0 : index
    %c384 = arith.constant 384 : index
    %13 = vector.load %arg7[%c0_14, %c384] : memref<64x640xbf16, #tpu.memory_space<vmem>>, vector<64x32xbf16>
    tpu.vector_store %arg7[%c0_14, %c384], %12 {strides = array<i32>} : memref<64x640xbf16, #tpu.memory_space<vmem>>, vector<64x32xbf16>,
    %c0_15 = arith.constant 0 : index
    %c4 = arith.constant 4 : index
    %c0_16 = arith.constant 0 : index
    %14 = vector.load %arg1[%c0_15, %c4, %c0_16] : memref<8x16x32xbf16, #tpu.memory_space<vmem>>, vector<8x8x32xbf16>
    %15 = vector.shape_cast %14 : vector<8x8x32xbf16> to vector<64x32xbf16>
    %c0_17 = arith.constant 0 : index
    %c512 = arith.constant 512 : index
    %16 = vector.load %arg7[%c0_17, %c512] : memref<64x640xbf16, #tpu.memory_space<vmem>>, vector<64x32xbf16>
    tpu.vector_store %arg7[%c0_17, %c512], %15 {strides = array<i32>} : memref<64x640xbf16, #tpu.memory_space<vmem>>, vector<64x32xbf16>,
    %c0_18 = arith.constant 0 : index
    %c0_19 = arith.constant 0 : index
    %17 = vector.load %arg7[%c0_18, %c0_19] : memref<64x640xbf16, #tpu.memory_space<vmem>>, vector<64x640xbf16>
    %c0_20 = arith.constant 0 : index
    %c0_21 = arith.constant 0 : index
    %18 = vector.load %arg2[%c0_20, %c0_21] : memref<640x384xbf16, #tpu.memory_space<vmem>>, vector<640x384xbf16>
    %cst_22 = arith.constant dense<0.000000e+00> : vector<64x384xf32>
    %19 = tpu.matmul %17, %18, %cst_22 {dimension_numbers = #tpu.dot_dimension_numbers<[1], [0], [0], [1], [0, 0, 1, 1], [], []>} : vector<64x640xbf16>, vector<640x384xbf16>, vector<64x384xf32> -> vector<64x384xf32>
    %c0_23 = arith.constant 0 : index
    %c0_24 = arith.constant 0 : index
    %20 = vector.load %arg3[%c0_23, %c0_24] : memref<1x384xf32, #tpu.memory_space<vmem>>, vector<1x384xf32>
    %21 = vector.broadcast %20 : vector<1x384xf32> to vector<64x384xf32>
    %22 = arith.addf %19, %21 : vector<64x384xf32>
    %cst_25 = arith.constant 0.000000e+00 : f32
    %23 = vector.broadcast %cst_25 : f32 to vector<64x384xf32>
    %24 = arith.maximumf %22, %23 : vector<64x384xf32>
    %25 = vector.shape_cast %24 : vector<64x384xf32> to vector<8x8x384xf32>
    %26 = tpu.iota {dimensions = array<i32: 0>} : vector<8x384xi32>
    %27 = tpu.iota {dimensions = array<i32: 1>} : vector<8x384xi32>
    %c128_i32 = arith.constant 128 : i32
    %28 = vector.broadcast %c128_i32 : i32 to vector<8x384xi32>
    %29 = arith.cmpi slt, %27, %28 : vector<8x384xi32>
    %c256_i32 = arith.constant 256 : i32
    %30 = vector.broadcast %c256_i32 : i32 to vector<8x384xi32>
    %31 = arith.cmpi slt, %27, %30 : vector<8x384xi32>
    %c5_i32 = arith.constant 5 : i32
    %c4_i32 = arith.constant 4 : i32
    %32 = vector.broadcast %c5_i32 : i32 to vector<8x384xi32>
    %33 = vector.broadcast %c4_i32 : i32 to vector<8x384xi32>
    %34 = arith.select %31, %32, %33 : vector<8x384xi1>, vector<8x384xi32>
    %c6_i32 = arith.constant 6 : i32
    %35 = vector.broadcast %c6_i32 : i32 to vector<8x384xi32>
    %36 = arith.select %29, %35, %34 : vector<8x384xi1>, vector<8x384xi32>
    %37 = arith.cmpi slt, %26, %36 : vector<8x384xi32>
    %38 = vector.shape_cast %37 : vector<8x384xi1> to vector<1x8x384xi1>
    %cst_26 = arith.constant 0.000000e+00 : f32
    %39 = vector.shape_cast %38 : vector<1x8x384xi1> to vector<1x8x384xi1>
    %40 = vector.broadcast %39 : vector<1x8x384xi1> to vector<8x8x384xi1>
    %41 = vector.broadcast %cst_26 : f32 to vector<8x8x384xf32>
    %42 = arith.select %40, %25, %41 : vector<8x8x384xi1>, vector<8x8x384xf32>
    %cst_27 = arith.constant dense<0xFF800000> : vector<8x384xf32>
    %43 = vector.multi_reduction <maximumf>, %42, %cst_27 [1] : vector<8x8x384xf32> to vector<8x384xf32>
    %c0_28 = arith.constant 0 : index
    %c0_29 = arith.constant 0 : index
    %44 = vector.load %arg4[%c0_28, %c0_29] : memref<1x384xf32, #tpu.memory_space<vmem>>, vector<1x384xf32>
    %45 = vector.broadcast %44 : vector<1x384xf32> to vector<8x384xf32>
    %46 = arith.mulf %43, %45 : vector<8x384xf32>
    %cst_30 = arith.constant dense<0.000000e+00> : vector<8xf32>
    %47 = vector.multi_reduction <add>, %46, %cst_30 [1] : vector<8x384xf32> to vector<8xf32>
    %48 = vector.shape_cast %47 : vector<8xf32> to vector<8x1xf32>
    %c0_31 = arith.constant 0 : index
    %c0_32 = arith.constant 0 : index
    %49 = memref.load %arg5[%c0_31, %c0_32] : memref<1x1xf32, #tpu.memory_space<smem>>
    %50 = vector.broadcast %49 : f32 to vector<8x1xf32>
    %51 = arith.addf %48, %50 : vector<8x1xf32>
    %52 = arith.negf %51 : vector<8x1xf32>
    %53 = math.exp %52 : vector<8x1xf32>
    %cst_33 = arith.constant 1.000000e+00 : f32
    %54 = vector.broadcast %cst_33 : f32 to vector<8x1xf32>
    %55 = arith.addf %54, %53 : vector<8x1xf32>
    %56 = arith.divf %54, %55 : vector<8x1xf32>
    %57 = tpu.iota {dimensions = array<i32: 1>} : vector<8x128xi32>
    %c0_i32 = arith.constant 0 : i32
    %58 = vector.broadcast %c0_i32 : i32 to vector<8x128xi32>
    %59 = arith.cmpi eq, %57, %58 : vector<8x128xi32>
    %c1_i32 = arith.constant 1 : i32
    %60 = vector.broadcast %c1_i32 : i32 to vector<8x128xi32>
    %61 = arith.cmpi eq, %57, %60 : vector<8x128xi32>
    %cst_34 = arith.constant 1.000000e+00 : f32
    %62 = vector.broadcast %cst_34 : f32 to vector<8x1xf32>
    %63 = arith.subf %62, %56 : vector<8x1xf32>
    %cst_35 = arith.constant 0.000000e+00 : f32
    %64 = vector.shape_cast %63 : vector<8x1xf32> to vector<8x1xf32>
    %65 = vector.broadcast %64 : vector<8x1xf32> to vector<8x128xf32>
    %66 = vector.broadcast %cst_35 : f32 to vector<8x128xf32>
    %67 = arith.select %61, %65, %66 : vector<8x128xi1>, vector<8x128xf32>
    %68 = vector.shape_cast %56 : vector<8x1xf32> to vector<8x1xf32>
    %69 = vector.broadcast %68 : vector<8x1xf32> to vector<8x128xf32>
    %70 = arith.select %59, %69, %67 : vector<8x128xi1>, vector<8x128xf32>
    %c0_36 = arith.constant 0 : index
    %c0_37 = arith.constant 0 : index
    %71 = vector.load %arg6[%c0_36, %c0_37] : memref<8x128xf32, #tpu.memory_space<vmem>>, vector<8x128xf32>
    tpu.vector_store %arg6[%c0_36, %c0_37], %70 {strides = array<i32>} : memref<8x128xf32, #tpu.memory_space<vmem>>, vector<8x128xf32>,
    return
  }
  func.func @transform_0(%arg0: i32) -> (i32, i32, i32) {
    %c0_i32 = arith.constant 0 : i32
    %c0_i32_0 = arith.constant 0 : i32
    %c0_i32_1 = arith.constant 0 : i32
    return %arg0, %c0_i32, %c0_i32_0 : i32, i32, i32
  }
  func.func @transform_1(%arg0: i32) -> (i32, i32) {
    %c0_i32 = arith.constant 0 : i32
    %c0_i32_0 = arith.constant 0 : i32
    %c0_i32_1 = arith.constant 0 : i32
    return %c0_i32, %c0_i32_0 : i32, i32
  }
  func.func @transform_2(%arg0: i32) -> (i32, i32) {
    %c0_i32 = arith.constant 0 : i32
    %c0_i32_0 = arith.constant 0 : i32
    %c0_i32_1 = arith.constant 0 : i32
    return %c0_i32, %c0_i32_0 : i32, i32
  }
  func.func @transform_3(%arg0: i32) -> (i32, i32) {
    %c0_i32 = arith.constant 0 : i32
    %c0_i32_0 = arith.constant 0 : i32
    %c0_i32_1 = arith.constant 0 : i32
    return %c0_i32, %c0_i32_0 : i32, i32
  }
  func.func @transform_4(%arg0: i32) -> (i32, i32) {
    %c0_i32 = arith.constant 0 : i32
    %c0_i32_0 = arith.constant 0 : i32
    %c0_i32_1 = arith.constant 0 : i32
    return %c0_i32, %c0_i32_0 : i32, i32
  }
  func.func @transform_5(%arg0: i32) -> (i32, i32) {
    %c0_i32 = arith.constant 0 : i32
    %c0_i32_0 = arith.constant 0 : i32
    return %arg0, %c0_i32 : i32, i32
  }
}

</mosaic_0001>

<llo_original>
// kernel: _lambda_.1
$region0: #{_lambda_.1}
  #allocation0 [shape = 'u32[]', space=smem, size = 0x4, offset = 0x4, fixed_abs, tag = 'smem constant byte address 0x4 - core index']
  #allocation1 [shape = 'u32[144,128]{1,0:T(1,128)}', space=vmem, size = 0x12000, scoped, tag = 'internal scratch']
  #allocation2 [shape = 'bf16[64,640]{1,0:T(16,128)(2,1)}', space=vmem, size = 0x14000, scoped, tag = 'scratch operand']
  #allocation3 [shape = 'f32[1,1]{1,0:T(1,128)S(6)}', space=smem, size = 0x200, scoped, tag = 'scoped memory for _lambda_.1']
  %s0 = inlined_call_operand.vmem [shape: bf16[8,16,32], index: 0, kind: input, shape index: {}]
  %s1 = inlined_call_operand.vmem [shape: bf16[640,384], index: 1, kind: input, shape index: {}]
  %s2 = inlined_call_operand.vmem [shape: f32[1,384], index: 2, kind: input, shape index: {}]
  %s3 = inlined_call_operand.vmem [shape: f32[1,384], index: 3, kind: input, shape index: {}]
  %s4 = inlined_call_operand.<no memory space> [shape: f32[1,1], index: 4, kind: input, shape index: {}]
  %s5 = inlined_call_operand.vmem [shape: f32[8,128], index: 5, kind: output, shape index: {}]
  %s6 = sld [smem:[#allocation0]]
  $region30: #{_lambda_.1} parent=0
    _
  %s8 = ssub.s32 1, %s6
  %s9 = scalar_select 0, %s8, %s6
  %10 = sst [smem:[#allocation3]] %s4
  // Predicated region
  $region2: #{_lambda_.1} parent=0 // pred_check
    _
  $region3: #{_lambda_.1} parent=0 // pred_check_branch
    %12 = sbr.rel (0) target = $region5
  $region4: #{_lambda_.1} parent=0 // pred_region
    _
  $region5: #{_lambda_.1} parent=0 // pred_fallthru
    _
  // Predicated region
  $region6: #{_lambda_.1} parent=0 // pred_check
    _
  $region7: #{_lambda_.1} parent=0 // pred_check_branch
    %14 = sbr.rel (0) target = $region9
  $region8: #{_lambda_.1} parent=0 // pred_region
    _
  $region9: #{_lambda_.1} parent=0 // pred_fallthru
    _
  // Predicated region
  $region10: #{_lambda_.1} parent=0 // pred_check
    _
  $region11: #{_lambda_.1} parent=0 // pred_check_branch
    %16 = sbr.rel (0) target = $region13
  $region12: #{_lambda_.1} parent=0 // pred_region
    _
  $region13: #{_lambda_.1} parent=0 // pred_fallthru
    _
  // Predicated region
  $region14: #{_lambda_.1} parent=0 // pred_check
    _
  $region15: #{_lambda_.1} parent=0 // pred_check_branch
    %18 = sbr.rel (0) target = $region17
  $region16: #{_lambda_.1} parent=0 // pred_region
    _
  $region17: #{_lambda_.1} parent=0 // pred_fallthru
    _
  // Predicated region
  $region18: #{_lambda_.1} parent=0 // pred_check
    _
  $region19: #{_lambda_.1} parent=0 // pred_check_branch
    %20 = sbr.rel (0) target = $region21
  $region20: #{_lambda_.1} parent=0 // pred_region
    _
  $region21: #{_lambda_.1} parent=0 // pred_fallthru
    _
  %22 = vst [vmem:[#allocation2] sm:$0xff] 0
  %23 = vst [vmem:[#allocation2 + $0x8] sm:$0xff] 0
  %24 = vst [vmem:[#allocation2 + $0x10] sm:$0xff] 0
  %25 = vst [vmem:[#allocation2 + $0x18] sm:$0xff] 0
  %26 = vst [vmem:[#allocation2 + $0x20] sm:$0xff] 0
  %27 = vst [vmem:[#allocation2 + $0x28] sm:$0xff] 0
  %28 = vst [vmem:[#allocation2 + $0x30] sm:$0xff] 0
  %29 = vst [vmem:[#allocation2 + $0x38] sm:$0xff] 0
  %30 = vst [vmem:[#allocation2 + $0x40] sm:$0xff] 0
  %31 = vst [vmem:[#allocation2 + $0x48] sm:$0xff] 0
  %32 = vst [vmem:[#allocation2 + $0x50] sm:$0xff] 0
  %33 = vst [vmem:[#allocation2 + $0x58] sm:$0xff] 0
  %34 = vst [vmem:[#allocation2 + $0x60] sm:$0xff] 0
  %35 = vst [vmem:[#allocation2 + $0x68] sm:$0xff] 0
  %36 = vst [vmem:[#allocation2 + $0x70] sm:$0xff] 0
  %37 = vst [vmem:[#allocation2 + $0x78] sm:$0xff] 0
  %38 = vst [vmem:[#allocation2 + $0x80] sm:$0xff] 0
  %39 = vst [vmem:[#allocation2 + $0x88] sm:$0xff] 0
  %40 = vst [vmem:[#allocation2 + $0x90] sm:$0xff] 0
  %41 = vst [vmem:[#allocation2 + $0x98] sm:$0xff] 0
  %v42 = vld [vmem:[%s0] sm:$0xf]
  %v43 = vld [vmem:[%s0 + $0x8] sm:$0xf]
  %v44 = vld [vmem:[%s0 + $0x10] sm:$0xf]
  %v45 = vld [vmem:[%s0 + $0x18] sm:$0xf]
  %v46 = vld [vmem:[%s0 + $0x20] sm:$0xf]
  %v47 = vld [vmem:[%s0 + $0x28] sm:$0xf]
  %v48 = vld [vmem:[%s0 + $0x30] sm:$0xf]
  %v49 = vld [vmem:[%s0 + $0x38] sm:$0xf]
  %v58 = vunpack.c.l.b16 %v42
  %v59 = vunpack.c.l.b16 %v43
  %v60 = vunpack.c.l.b16 %v44
  %v61 = vunpack.c.l.b16 %v45
  %v62 = vunpack.c.l.b16 %v46
  %v63 = vunpack.c.l.b16 %v47
  %v64 = vunpack.c.l.b16 %v48
  %v65 = vunpack.c.l.b16 %v49
  %v66 = vpack.c.b16 %v59, %v58
  %v67 = vpack.c.b16 %v61, %v60
  %v68 = vpack.c.b16 %v63, %v62
  %v69 = vpack.c.b16 %v65, %v64
  %vm74 = vcmask 261120
  %75 = vst.msk [vmem:[#allocation2] sm:$0xff] %vm74, %v66
  %76 = vst.msk [vmem:[#allocation2 + $0x28] sm:$0xff] %vm74, %v67
  %77 = vst.msk [vmem:[#allocation2 + $0x50] sm:$0xff] %vm74, %v68
  %78 = vst.msk [vmem:[#allocation2 + $0x78] sm:$0xff] %vm74, %v69
  %v79 = vld [vmem:[%s0] sm:$0xf]
  %v80 = vld [vmem:[%s0 + $0x4] sm:$0x1]
  %v81 = vld [vmem:[%s0 + $0x8] sm:$0xf]
  %v82 = vld [vmem:[%s0 + $0xc] sm:$0x1]
  %v83 = vld [vmem:[%s0 + $0x10] sm:$0xf]
  %v84 = vld [vmem:[%s0 + $0x14] sm:$0x1]
  %v85 = vld [vmem:[%s0 + $0x18] sm:$0xf]
  %v86 = vld [vmem:[%s0 + $0x1c] sm:$0x1]
  %v87 = vld [vmem:[%s0 + $0x20] sm:$0xf]
  %v88 = vld [vmem:[%s0 + $0x24] sm:$0x1]
  %v89 = vld [vmem:[%s0 + $0x28] sm:$0xf]
  %v90 = vld [vmem:[%s0 + $0x2c] sm:$0x1]
  %v91 = vld [vmem:[%s0 + $0x30] sm:$0xf]
  %v92 = vld [vmem:[%s0 + $0x34] sm:$0x1]
  %v93 = vld [vmem:[%s0 + $0x38] sm:$0xf]
  %v94 = vld [vmem:[%s0 + $0x3c] sm:$0x1]
  %vm95 = vsmask.f32 3328
  %vm96 = vsmask.f32 7440
  %vm97 = vmor %vm95, %vm96
  %v99 = vshrl.u32 %v79, 16
  %v101 = vrot.slane %v99, 4
  %v102 = vshll.u32 %v79, 16
  %v104 = vrot.slane %v102, 5
  %v105 = vor.u32 %v101, %v104
  %v106 = vrot.slane %v105, 4
  %v108 = vshll.u32 %v80, 16
  %v110 = vrot.slane %v108, 5
  %v111 = vsel %vm97, %v106, %v110
  %v113 = vshrl.u32 %v81, 16
  %v115 = vrot.slane %v113, 4
  %v116 = vshll.u32 %v81, 16
  %v118 = vrot.slane %v116, 5
  %v119 = vor.u32 %v115, %v118
  %v120 = vrot.slane %v119, 4
  %v122 = vshll.u32 %v82, 16
  %v124 = vrot.slane %v122, 5
  %v125 = vsel %vm97, %v120, %v124
  %v127 = vshrl.u32 %v83, 16
  %v129 = vrot.slane %v127, 4
  %v130 = vshll.u32 %v83, 16
  %v132 = vrot.slane %v130, 5
  %v133 = vor.u32 %v129, %v132
  %v134 = vrot.slane %v133, 4
  %v136 = vshll.u32 %v84, 16
  %v138 = vrot.slane %v136, 5
  %v139 = vsel %vm97, %v134, %v138
  %v141 = vshrl.u32 %v85, 16
  %v143 = vrot.slane %v141, 4
  %v144 = vshll.u32 %v85, 16
  %v146 = vrot.slane %v144, 5
  %v147 = vor.u32 %v143, %v146
  %v148 = vrot.slane %v147, 4
  %v150 = vshll.u32 %v86, 16
  %v152 = vrot.slane %v150, 5
  %v153 = vsel %vm97, %v148, %v152
  %v155 = vshrl.u32 %v87, 16
  %v157 = vrot.slane %v155, 4
  %v158 = vshll.u32 %v87, 16
  %v160 = vrot.slane %v158, 5
  %v161 = vor.u32 %v157, %v160
  %v162 = vrot.slane %v161, 4
  %v164 = vshll.u32 %v88, 16
  %v166 = vrot.slane %v164, 5
  %v167 = vsel %vm97, %v162, %v166
  %v169 = vshrl.u32 %v89, 16
  %v171 = vrot.slane %v169, 4
  %v172 = vshll.u32 %v89, 16
  %v174 = vrot.slane %v172, 5
  %v175 = vor.u32 %v171, %v174
  %v176 = vrot.slane %v175, 4
  %v178 = vshll.u32 %v90, 16
  %v180 = vrot.slane %v178, 5
  %v181 = vsel %vm97, %v176, %v180
  %v183 = vshrl.u32 %v91, 16
  %v185 = vrot.slane %v183, 4
  %v186 = vshll.u32 %v91, 16
  %v188 = vrot.slane %v186, 5
  %v189 = vor.u32 %v185, %v188
  %v190 = vrot.slane %v189, 4
  %v192 = vshll.u32 %v92, 16
  %v194 = vrot.slane %v192, 5
  %v195 = vsel %vm97, %v190, %v194
  %v197 = vshrl.u32 %v93, 16
  %v199 = vrot.slane %v197, 4
  %v200 = vshll.u32 %v93, 16
  %v202 = vrot.slane %v200, 5
  %v203 = vor.u32 %v199, %v202
  %v204 = vrot.slane %v203, 4
  %v206 = vshll.u32 %v94, 16
  %v208 = vrot.slane %v206, 5
  %v209 = vsel %vm97, %v204, %v208
  %v210 = vunpack.c.l.b16 %v111
  %v211 = vunpack.c.l.b16 %v125
  %v212 = vunpack.c.l.b16 %v139
  %v213 = vunpack.c.l.b16 %v153
  %v214 = vunpack.c.l.b16 %v167
  %v215 = vunpack.c.l.b16 %v181
  %v216 = vunpack.c.l.b16 %v195
  %v217 = vunpack.c.l.b16 %v209
  %v218 = vpack.c.b16 %v211, %v210
  %v219 = vpack.c.b16 %v213, %v212
  %v220 = vpack.c.b16 %v215, %v214
  %v221 = vpack.c.b16 %v217, %v216
  %226 = vst.msk [vmem:[#allocation2 + $0x8] sm:$0xff] %vm74, %v218
  %227 = vst.msk [vmem:[#allocation2 + $0x30] sm:$0xff] %vm74, %v219
  %228 = vst.msk [vmem:[#allocation2 + $0x58] sm:$0xff] %vm74, %v220
  %229 = vst.msk [vmem:[#allocation2 + $0x80] sm:$0xff] %vm74, %v221
  %v230 = vld [vmem:[%s0] sm:$0xe]
  %v231 = vld [vmem:[%s0 + $0x4] sm:$0x1]
  %v232 = vld [vmem:[%s0 + $0x8] sm:$0xe]
  %v233 = vld [vmem:[%s0 + $0xc] sm:$0x1]
  %v234 = vld [vmem:[%s0 + $0x10] sm:$0xe]
  %v235 = vld [vmem:[%s0 + $0x14] sm:$0x1]
  %v236 = vld [vmem:[%s0 + $0x18] sm:$0xe]
  %v237 = vld [vmem:[%s0 + $0x1c] sm:$0x1]
  %v238 = vld [vmem:[%s0 + $0x20] sm:$0xe]
  %v239 = vld [vmem:[%s0 + $0x24] sm:$0x1]
  %v240 = vld [vmem:[%s0 + $0x28] sm:$0xe]
  %v241 = vld [vmem:[%s0 + $0x2c] sm:$0x1]
  %v242 = vld [vmem:[%s0 + $0x30] sm:$0xe]
  %v243 = vld [vmem:[%s0 + $0x34] sm:$0x1]
  %v244 = vld [vmem:[%s0 + $0x38] sm:$0xe]
  %v245 = vld [vmem:[%s0 + $0x3c] sm:$0x1]
  %vm262 = vcmask 1042432
  %vm263 = vcmask 1046532
  %vm264 = vmor %vm262, %vm263
  %v265 = vrot.slane %v230, 5
  %v266 = vrot.slane %v265, 4
  %v267 = vrot.slane %v231, 5
  %v268 = vsel %vm264, %v266, %v267
  %v269 = vrot.slane %v232, 5
  %v270 = vrot.slane %v269, 4
  %v271 = vrot.slane %v233, 5
  %v272 = vsel %vm264, %v270, %v271
  %v273 = vrot.slane %v234, 5
  %v274 = vrot.slane %v273, 4
  %v275 = vrot.slane %v235, 5
  %v276 = vsel %vm264, %v274, %v275
  %v277 = vrot.slane %v236, 5
  %v278 = vrot.slane %v277, 4
  %v279 = vrot.slane %v237, 5
  %v280 = vsel %vm264, %v278, %v279
  %v281 = vrot.slane %v238, 5
  %v282 = vrot.slane %v281, 4
  %v283 = vrot.slane %v239, 5
  %v284 = vsel %vm264, %v282, %v283
  %v285 = vrot.slane %v240, 5
  %v286 = vrot.slane %v285, 4
  %v287 = vrot.slane %v241, 5
  %v288 = vsel %vm264, %v286, %v287
  %v289 = vrot.slane %v242, 5
  %v290 = vrot.slane %v289, 4
  %v291 = vrot.slane %v243, 5
  %v292 = vsel %vm264, %v290, %v291
  %v293 = vrot.slane %v244, 5
  %v294 = vrot.slane %v293, 4
  %v295 = vrot.slane %v245, 5
  %v296 = vsel %vm264, %v294, %v295
  %v297 = vunpack.c.l.b16 %v268
  %v298 = vunpack.c.l.b16 %v272
  %v299 = vunpack.c.l.b16 %v276
  %v300 = vunpack.c.l.b16 %v280
  %v301 = vunpack.c.l.b16 %v284
  %v302 = vunpack.c.l.b16 %v288
  %v303 = vunpack.c.l.b16 %v292
  %v304 = vunpack.c.l.b16 %v296
  %v305 = vpack.c.b16 %v298, %v297
  %v306 = vpack.c.b16 %v300, %v299
  %v307 = vpack.c.b16 %v302, %v301
  %v308 = vpack.c.b16 %v304, %v303
  %313 = vst.msk [vmem:[#allocation2 + $0x10] sm:$0xff] %vm74, %v305
  %314 = vst.msk [vmem:[#allocation2 + $0x38] sm:$0xff] %vm74, %v306
  %315 = vst.msk [vmem:[#allocation2 + $0x60] sm:$0xff] %vm74, %v307
  %316 = vst.msk [vmem:[#allocation2 + $0x88] sm:$0xff] %vm74, %v308
  %v317 = vld [vmem:[%s0] sm:$0xe]
  %v318 = vld [vmem:[%s0 + $0x4] sm:$0x3]
  %v319 = vld [vmem:[%s0 + $0x8] sm:$0xe]
  %v320 = vld [vmem:[%s0 + $0xc] sm:$0x3]
  %v321 = vld [vmem:[%s0 + $0x10] sm:$0xe]
  %v322 = vld [vmem:[%s0 + $0x14] sm:$0x3]
  %v323 = vld [vmem:[%s0 + $0x18] sm:$0xe]
  %v324 = vld [vmem:[%s0 + $0x1c] sm:$0x3]
  %v325 = vld [vmem:[%s0 + $0x20] sm:$0xe]
  %v326 = vld [vmem:[%s0 + $0x24] sm:$0x3]
  %v327 = vld [vmem:[%s0 + $0x28] sm:$0xe]
  %v328 = vld [vmem:[%s0 + $0x2c] sm:$0x3]
  %v329 = vld [vmem:[%s0 + $0x30] sm:$0xe]
  %v330 = vld [vmem:[%s0 + $0x34] sm:$0x3]
  %v331 = vld [vmem:[%s0 + $0x38] sm:$0xe]
  %v332 = vld [vmem:[%s0 + $0x3c] sm:$0x3]
  %vm333 = vsmask.f32 2304
  %vm334 = vsmask.f32 6416
  %vm335 = vmor %vm333, %vm334
  %v337 = vshrl.u32 %v317, 16
  %v339 = vrot.slane %v337, 5
  %v340 = vshll.u32 %v317, 16
  %v342 = vrot.slane %v340, 6
  %v343 = vor.u32 %v339, %v342
  %v344 = vrot.slane %v343, 4
  %v346 = vshrl.u32 %v318, 16
  %v348 = vrot.slane %v346, 5
  %v349 = vshll.u32 %v318, 16
  %v351 = vrot.slane %v349, 6
  %v352 = vor.u32 %v348, %v351
  %v353 = vsel %vm335, %v344, %v352
  %v355 = vshrl.u32 %v319, 16
  %v357 = vrot.slane %v355, 5
  %v358 = vshll.u32 %v319, 16
  %v360 = vrot.slane %v358, 6
  %v361 = vor.u32 %v357, %v360
  %v362 = vrot.slane %v361, 4
  %v364 = vshrl.u32 %v320, 16
  %v366 = vrot.slane %v364, 5
  %v367 = vshll.u32 %v320, 16
  %v369 = vrot.slane %v367, 6
  %v370 = vor.u32 %v366, %v369
  %v371 = vsel %vm335, %v362, %v370
  %v373 = vshrl.u32 %v321, 16
  %v375 = vrot.slane %v373, 5
  %v376 = vshll.u32 %v321, 16
  %v378 = vrot.slane %v376, 6
  %v379 = vor.u32 %v375, %v378
  %v380 = vrot.slane %v379, 4
  %v382 = vshrl.u32 %v322, 16
  %v384 = vrot.slane %v382, 5
  %v385 = vshll.u32 %v322, 16
  %v387 = vrot.slane %v385, 6
  %v388 = vor.u32 %v384, %v387
  %v389 = vsel %vm335, %v380, %v388
  %v391 = vshrl.u32 %v323, 16
  %v393 = vrot.slane %v391, 5
  %v394 = vshll.u32 %v323, 16
  %v396 = vrot.slane %v394, 6
  %v397 = vor.u32 %v393, %v396
  %v398 = vrot.slane %v397, 4
  %v400 = vshrl.u32 %v324, 16
  %v402 = vrot.slane %v400, 5
  %v403 = vshll.u32 %v324, 16
  %v405 = vrot.slane %v403, 6
  %v406 = vor.u32 %v402, %v405
  %v407 = vsel %vm335, %v398, %v406
  %v409 = vshrl.u32 %v325, 16
  %v411 = vrot.slane %v409, 5
  %v412 = vshll.u32 %v325, 16
  %v414 = vrot.slane %v412, 6
  %v415 = vor.u32 %v411, %v414
  %v416 = vrot.slane %v415, 4
  %v418 = vshrl.u32 %v326, 16
  %v420 = vrot.slane %v418, 5
  %v421 = vshll.u32 %v326, 16
  %v423 = vrot.slane %v421, 6
  %v424 = vor.u32 %v420, %v423
  %v425 = vsel %vm335, %v416, %v424
  %v427 = vshrl.u32 %v327, 16
  %v429 = vrot.slane %v427, 5
  %v430 = vshll.u32 %v327, 16
  %v432 = vrot.slane %v430, 6
  %v433 = vor.u32 %v429, %v432
  %v434 = vrot.slane %v433, 4
  %v436 = vshrl.u32 %v328, 16
  %v438 = vrot.slane %v436, 5
  %v439 = vshll.u32 %v328, 16
  %v441 = vrot.slane %v439, 6
  %v442 = vor.u32 %v438, %v441
  %v443 = vsel %vm335, %v434, %v442
  %v445 = vshrl.u32 %v329, 16
  %v447 = vrot.slane %v445, 5
  %v448 = vshll.u32 %v329, 16
  %v450 = vrot.slane %v448, 6
  %v451 = vor.u32 %v447, %v450
  %v452 = vrot.slane %v451, 4
  %v454 = vshrl.u32 %v330, 16
  %v456 = vrot.slane %v454, 5
  %v457 = vshll.u32 %v330, 16
  %v459 = vrot.slane %v457, 6
  %v460 = vor.u32 %v456, %v459
  %v461 = vsel %vm335, %v452, %v460
  %v463 = vshrl.u32 %v331, 16
  %v465 = vrot.slane %v463, 5
  %v466 = vshll.u32 %v331, 16
  %v468 = vrot.slane %v466, 6
  %v469 = vor.u32 %v465, %v468
  %v470 = vrot.slane %v469, 4
  %v472 = vshrl.u32 %v332, 16
  %v474 = vrot.slane %v472, 5
  %v475 = vshll.u32 %v332, 16
  %v477 = vrot.slane %v475, 6
  %v478 = vor.u32 %v474, %v477
  %v479 = vsel %vm335, %v470, %v478
  %v480 = vunpack.c.l.b16 %v353
  %v481 = vunpack.c.l.b16 %v371
  %v482 = vunpack.c.l.b16 %v389
  %v483 = vunpack.c.l.b16 %v407
  %v484 = vunpack.c.l.b16 %v425
  %v485 = vunpack.c.l.b16 %v443
  %v486 = vunpack.c.l.b16 %v461
  %v487 = vunpack.c.l.b16 %v479
  %v488 = vpack.c.b16 %v481, %v480
  %v489 = vpack.c.b16 %v483, %v482
  %v490 = vpack.c.b16 %v485, %v484
  %v491 = vpack.c.b16 %v487, %v486
  %496 = vst.msk [vmem:[#allocation2 + $0x18] sm:$0xff] %vm74, %v488
  %497 = vst.msk [vmem:[#allocation2 + $0x40] sm:$0xff] %vm74, %v489
  %498 = vst.msk [vmem:[#allocation2 + $0x68] sm:$0xff] %vm74, %v490
  %499 = vst.msk [vmem:[#allocation2 + $0x90] sm:$0xff] %vm74, %v491
  %v500 = vld [vmem:[%s0] sm:$0xc]
  %v501 = vld [vmem:[%s0 + $0x4] sm:$0x3]
  %v502 = vld [vmem:[%s0 + $0x8] sm:$0xc]
  %v503 = vld [vmem:[%s0 + $0xc] sm:$0x3]
  %v504 = vld [vmem:[%s0 + $0x10] sm:$0xc]
  %v505 = vld [vmem:[%s0 + $0x14] sm:$0x3]
  %v506 = vld [vmem:[%s0 + $0x18] sm:$0xc]
  %v507 = vld [vmem:[%s0 + $0x1c] sm:$0x3]
  %v508 = vld [vmem:[%s0 + $0x20] sm:$0xc]
  %v509 = vld [vmem:[%s0 + $0x24] sm:$0x3]
  %v510 = vld [vmem:[%s0 + $0x28] sm:$0xc]
  %v511 = vld [vmem:[%s0 + $0x2c] sm:$0x3]
  %v512 = vld [vmem:[%s0 + $0x30] sm:$0xc]
  %v513 = vld [vmem:[%s0 + $0x34] sm:$0x3]
  %v514 = vld [vmem:[%s0 + $0x38] sm:$0xc]
  %v515 = vld [vmem:[%s0 + $0x3c] sm:$0x3]
  %vm532 = vcmask 1041408
  %vm533 = vcmask 1045508
  %vm534 = vmor %vm532, %vm533
  %v535 = vrot.slane %v500, 6
  %v536 = vrot.slane %v535, 4
  %v537 = vrot.slane %v501, 6
  %v538 = vsel %vm534, %v536, %v537
  %v539 = vrot.slane %v502, 6
  %v540 = vrot.slane %v539, 4
  %v541 = vrot.slane %v503, 6
  %v542 = vsel %vm534, %v540, %v541
  %v543 = vrot.slane %v504, 6
  %v544 = vrot.slane %v543, 4
  %v545 = vrot.slane %v505, 6
  %v546 = vsel %vm534, %v544, %v545
  %v547 = vrot.slane %v506, 6
  %v548 = vrot.slane %v547, 4
  %v549 = vrot.slane %v507, 6
  %v550 = vsel %vm534, %v548, %v549
  %v551 = vrot.slane %v508, 6
  %v552 = vrot.slane %v551, 4
  %v553 = vrot.slane %v509, 6
  %v554 = vsel %vm534, %v552, %v553
  %v555 = vrot.slane %v510, 6
  %v556 = vrot.slane %v555, 4
  %v557 = vrot.slane %v511, 6
  %v558 = vsel %vm534, %v556, %v557
  %v559 = vrot.slane %v512, 6
  %v560 = vrot.slane %v559, 4
  %v561 = vrot.slane %v513, 6
  %v562 = vsel %vm534, %v560, %v561
  %v563 = vrot.slane %v514, 6
  %v564 = vrot.slane %v563, 4
  %v565 = vrot.slane %v515, 6
  %v566 = vsel %vm534, %v564, %v565
  %v567 = vunpack.c.l.b16 %v538
  %v568 = vunpack.c.l.b16 %v542
  %v569 = vunpack.c.l.b16 %v546
  %v570 = vunpack.c.l.b16 %v550
  %v571 = vunpack.c.l.b16 %v554
  %v572 = vunpack.c.l.b16 %v558
  %v573 = vunpack.c.l.b16 %v562
  %v574 = vunpack.c.l.b16 %v566
  %v575 = vpack.c.b16 %v568, %v567
  %v576 = vpack.c.b16 %v570, %v569
  %v577 = vpack.c.b16 %v572, %v571
  %v578 = vpack.c.b16 %v574, %v573
  %583 = vst.msk [vmem:[#allocation2 + $0x20] sm:$0xff] %vm74, %v575
  %584 = vst.msk [vmem:[#allocation2 + $0x48] sm:$0xff] %vm74, %v576
  %585 = vst.msk [vmem:[#allocation2 + $0x70] sm:$0xff] %vm74, %v577
  %586 = vst.msk [vmem:[#allocation2 + $0x98] sm:$0xff] %vm74, %v578
  %v587 = vld [vmem:[#allocation2] sm:$0xff]
  %v588 = vld [vmem:[#allocation2 + $0x8] sm:$0xff]
  %v589 = vld [vmem:[#allocation2 + $0x10] sm:$0xff]
  %v590 = vld [vmem:[#allocation2 + $0x18] sm:$0xff]
  %v591 = vld [vmem:[#allocation2 + $0x20] sm:$0xff]
  %v592 = vld [vmem:[#allocation2 + $0x28] sm:$0xff]
  %v593 = vld [vmem:[#allocation2 + $0x30] sm:$0xff]
  %v594 = vld [vmem:[#allocation2 + $0x38] sm:$0xff]
  %v595 = vld [vmem:[#allocation2 + $0x40] sm:$0xff]
  %v596 = vld [vmem:[#allocation2 + $0x48] sm:$0xff]
  %v597 = vld [vmem:[#allocation2 + $0x50] sm:$0xff]
  %v598 = vld [vmem:[#allocation2 + $0x58] sm:$0xff]
  %v599 = vld [vmem:[#allocation2 + $0x60] sm:$0xff]
  %v600 = vld [vmem:[#allocation2 + $0x68] sm:$0xff]
  %v601 = vld [vmem:[#allocation2 + $0x70] sm:$0xff]
  %v602 = vld [vmem:[#allocation2 + $0x78] sm:$0xff]
  %v603 = vld [vmem:[#allocation2 + $0x80] sm:$0xff]
  %v604 = vld [vmem:[#allocation2 + $0x88] sm:$0xff]
  %v605 = vld [vmem:[#allocation2 + $0x90] sm:$0xff]
  %v606 = vld [vmem:[#allocation2 + $0x98] sm:$0xff]
  %v607 = vld [vmem:[%s1] sm:$0xff]
  %v608 = vld [vmem:[%s1 + $0x8] sm:$0xf]
  %v609 = vld [vmem:[%s1 + $0xc] sm:$0xff]
  %v610 = vld [vmem:[%s1 + $0x14] sm:$0xf]
  %v611 = vld [vmem:[%s1 + $0x18] sm:$0xff]
  %v612 = vld [vmem:[%s1 + $0x20] sm:$0xf]
  %v613 = vld [vmem:[%s1 + $0x24] sm:$0xff]
  %v614 = vld [vmem:[%s1 + $0x2c] sm:$0xf]
  %v615 = vld [vmem:[%s1 + $0x30] sm:$0xff]
  %v616 = vld [vmem:[%s1 + $0x38] sm:$0xf]
  %v617 = vld [vmem:[%s1 + $0x3c] sm:$0xff]
  %v618 = vld [vmem:[%s1 + $0x44] sm:$0xf]
  %v619 = vld [vmem:[%s1 + $0x48] sm:$0xff]
  %v620 = vld [vmem:[%s1 + $0x50] sm:$0xf]
  %v621 = vld [vmem:[%s1 + $0x54] sm:$0xff]
  %v622 = vld [vmem:[%s1 + $0x5c] sm:$0xf]
  %v623 = vld [vmem:[%s1 + $0x60] sm:$0xff]
  %v624 = vld [vmem:[%s1 + $0x68] sm:$0xf]
  %v625 = vld [vmem:[%s1 + $0x6c] sm:$0xff]
  %v626 = vld [vmem:[%s1 + $0x74] sm:$0xf]
  %v627 = vld [vmem:[%s1 + $0x78] sm:$0xff]
  %v628 = vld [vmem:[%s1 + $0x80] sm:$0xf]
  %v629 = vld [vmem:[%s1 + $0x84] sm:$0xff]
  %v630 = vld [vmem:[%s1 + $0x8c] sm:$0xf]
  %v631 = vld [vmem:[%s1 + $0x90] sm:$0xff]
  %v632 = vld [vmem:[%s1 + $0x98] sm:$0xf]
  %v633 = vld [vmem:[%s1 + $0x9c] sm:$0xff]
  %v634 = vld [vmem:[%s1 + $0xa4] sm:$0xf]
  %v635 = vld [vmem:[%s1 + $0xa8] sm:$0xff]
  %v636 = vld [vmem:[%s1 + $0xb0] sm:$0xf]
  %v637 = vld [vmem:[%s1 + $0xb4] sm:$0xff]
  %v638 = vld [vmem:[%s1 + $0xbc] sm:$0xf]
  %v639 = vld [vmem:[%s1 + $0xc0] sm:$0xff]
  %v640 = vld [vmem:[%s1 + $0xc8] sm:$0xf]
  %v641 = vld [vmem:[%s1 + $0xcc] sm:$0xff]
  %v642 = vld [vmem:[%s1 + $0xd4] sm:$0xf]
  %v643 = vld [vmem:[%s1 + $0xd8] sm:$0xff]
  %v644 = vld [vmem:[%s1 + $0xe0] sm:$0xf]
  %v645 = vld [vmem:[%s1 + $0xe4] sm:$0xff]
  %v646 = vld [vmem:[%s1 + $0xec] sm:$0xf]
  %v647 = vld [vmem:[%s1 + $0xf0] sm:$0xff]
  %v648 = vld [vmem:[%s1 + $0xf8] sm:$0xf]
  %v649 = vld [vmem:[%s1 + $0xfc] sm:$0xff]
  %v650 = vld [vmem:[%s1 + $0x104] sm:$0xf]
  %v651 = vld [vmem:[%s1 + $0x108] sm:$0xff]
  %v652 = vld [vmem:[%s1 + $0x110] sm:$0xf]
  %v653 = vld [vmem:[%s1 + $0x114] sm:$0xff]
  %v654 = vld [vmem:[%s1 + $0x11c] sm:$0xf]
  %v655 = vld [vmem:[%s1 + $0x120] sm:$0xff]
  %v656 = vld [vmem:[%s1 + $0x128] sm:$0xf]
  %v657 = vld [vmem:[%s1 + $0x12c] sm:$0xff]
  %v658 = vld [vmem:[%s1 + $0x134] sm:$0xf]
  %v659 = vld [vmem:[%s1 + $0x138] sm:$0xff]
  %v660 = vld [vmem:[%s1 + $0x140] sm:$0xf]
  %v661 = vld [vmem:[%s1 + $0x144] sm:$0xff]
  %v662 = vld [vmem:[%s1 + $0x14c] sm:$0xf]
  %v663 = vld [vmem:[%s1 + $0x150] sm:$0xff]
  %v664 = vld [vmem:[%s1 + $0x158] sm:$0xf]
  %v665 = vld [vmem:[%s1 + $0x15c] sm:$0xff]
  %v666 = vld [vmem:[%s1 + $0x164] sm:$0xf]
  %v667 = vld [vmem:[%s1 + $0x168] sm:$0xff]
  %v668 = vld [vmem:[%s1 + $0x170] sm:$0xf]
  %v669 = vld [vmem:[%s1 + $0x174] sm:$0xff]
  %v670 = vld [vmem:[%s1 + $0x17c] sm:$0xf]
  %v671 = vld [vmem:[%s1 + $0x180] sm:$0xff]
  %v672 = vld [vmem:[%s1 + $0x188] sm:$0xf]
  %v673 = vld [vmem:[%s1 + $0x18c] sm:$0xff]
  %v674 = vld [vmem:[%s1 + $0x194] sm:$0xf]
  %v675 = vld [vmem:[%s1 + $0x198] sm:$0xff]
  %v676 = vld [vmem:[%s1 + $0x1a0] sm:$0xf]
  %v677 = vld [vmem:[%s1 + $0x1a4] sm:$0xff]
  %v678 = vld [vmem:[%s1 + $0x1ac] sm:$0xf]
  %v679 = vld [vmem:[%s1 + $0x1b0] sm:$0xff]
  %v680 = vld [vmem:[%s1 + $0x1b8] sm:$0xf]
  %v681 = vld [vmem:[%s1 + $0x1bc] sm:$0xff]
  %v682 = vld [vmem:[%s1 + $0x1c4] sm:$0xf]
  %v683 = vld [vmem:[%s1 + $0x1c8] sm:$0xff]
  %v684 = vld [vmem:[%s1 + $0x1d0] sm:$0xf]
  %v685 = vld [vmem:[%s1 + $0x1d4] sm:$0xff]
  %v686 = vld [vmem:[%s1 + $0x1dc] sm:$0xf]
  %v687 = vld [vmem:[%s1 + $0x1e0] sm:$0xff]
  %v688 = vld [vmem:[%s1 + $0x1e8] sm:$0xf]
  %v689 = vld [vmem:[%s1 + $0x1ec] sm:$0xff]
  %v690 = vld [vmem:[%s1 + $0x1f4] sm:$0xf]
  %v691 = vld [vmem:[%s1 + $0x1f8] sm:$0xff]
  %v692 = vld [vmem:[%s1 + $0x200] sm:$0xf]
  %v693 = vld [vmem:[%s1 + $0x204] sm:$0xff]
  %v694 = vld [vmem:[%s1 + $0x20c] sm:$0xf]
  %v695 = vld [vmem:[%s1 + $0x210] sm:$0xff]
  %v696 = vld [vmem:[%s1 + $0x218] sm:$0xf]
  %v697 = vld [vmem:[%s1 + $0x21c] sm:$0xff]
  %v698 = vld [vmem:[%s1 + $0x224] sm:$0xf]
  %v699 = vld [vmem:[%s1 + $0x228] sm:$0xff]
  %v700 = vld [vmem:[%s1 + $0x230] sm:$0xf]
  %v701 = vld [vmem:[%s1 + $0x234] sm:$0xff]
  %v702 = vld [vmem:[%s1 + $0x23c] sm:$0xf]
  %v703 = vld [vmem:[%s1 + $0x240] sm:$0xff]
  %v704 = vld [vmem:[%s1 + $0x248] sm:$0xf]
  %v705 = vld [vmem:[%s1 + $0x24c] sm:$0xff]
  %v706 = vld [vmem:[%s1 + $0x254] sm:$0xf]
  %v707 = vld [vmem:[%s1 + $0x258] sm:$0xff]
  %v708 = vld [vmem:[%s1 + $0x260] sm:$0xf]
  %v709 = vld [vmem:[%s1 + $0x264] sm:$0xff]
  %v710 = vld [vmem:[%s1 + $0x26c] sm:$0xf]
  %v711 = vld [vmem:[%s1 + $0x270] sm:$0xff]
  %v712 = vld [vmem:[%s1 + $0x278] sm:$0xf]
  %v713 = vld [vmem:[%s1 + $0x27c] sm:$0xff]
  %v714 = vld [vmem:[%s1 + $0x284] sm:$0xf]
  %v715 = vld [vmem:[%s1 + $0x288] sm:$0xff]
  %v716 = vld [vmem:[%s1 + $0x290] sm:$0xf]
  %v717 = vld [vmem:[%s1 + $0x294] sm:$0xff]
  %v718 = vld [vmem:[%s1 + $0x29c] sm:$0xf]
  %v719 = vld [vmem:[%s1 + $0x2a0] sm:$0xff]
  %v720 = vld [vmem:[%s1 + $0x2a8] sm:$0xf]
  %v721 = vld [vmem:[%s1 + $0x2ac] sm:$0xff]
  %v722 = vld [vmem:[%s1 + $0x2b4] sm:$0xf]
  %v723 = vld [vmem:[%s1 + $0x2b8] sm:$0xff]
  %v724 = vld [vmem:[%s1 + $0x2c0] sm:$0xf]
  %v725 = vld [vmem:[%s1 + $0x2c4] sm:$0xff]
  %v726 = vld [vmem:[%s1 + $0x2cc] sm:$0xf]
  %v727 = vld [vmem:[%s1 + $0x2d0] sm:$0xff]
  %v728 = vld [vmem:[%s1 + $0x2d8] sm:$0xf]
  %v729 = vld [vmem:[%s1 + $0x2dc] sm:$0xff]
  %v730 = vld [vmem:[%s1 + $0x2e4] sm:$0xf]
  %v731 = vld [vmem:[%s1 + $0x2e8] sm:$0xff]
  %v732 = vld [vmem:[%s1 + $0x2f0] sm:$0xf]
  %v733 = vld [vmem:[%s1 + $0x2f4] sm:$0xff]
  %v734 = vld [vmem:[%s1 + $0x2fc] sm:$0xf]
  %v735 = vld [vmem:[%s1 + $0x300] sm:$0xff]
  %v736 = vld [vmem:[%s1 + $0x308] sm:$0xf]
  %v737 = vld [vmem:[%s1 + $0x30c] sm:$0xff]
  %v738 = vld [vmem:[%s1 + $0x314] sm:$0xf]
  %v739 = vld [vmem:[%s1 + $0x318] sm:$0xff]
  %v740 = vld [vmem:[%s1 + $0x320] sm:$0xf]
  %v741 = vld [vmem:[%s1 + $0x324] sm:$0xff]
  %v742 = vld [vmem:[%s1 + $0x32c] sm:$0xf]
  %v743 = vld [vmem:[%s1 + $0x330] sm:$0xff]
  %v744 = vld [vmem:[%s1 + $0x338] sm:$0xf]
  %v745 = vld [vmem:[%s1 + $0x33c] sm:$0xff]
  %v746 = vld [vmem:[%s1 + $0x344] sm:$0xf]
  %v747 = vld [vmem:[%s1 + $0x348] sm:$0xff]
  %v748 = vld [vmem:[%s1 + $0x350] sm:$0xf]
  %v749 = vld [vmem:[%s1 + $0x354] sm:$0xff]
  %v750 = vld [vmem:[%s1 + $0x35c] sm:$0xf]
  %v751 = vld [vmem:[%s1 + $0x360] sm:$0xff]
  %v752 = vld [vmem:[%s1 + $0x368] sm:$0xf]
  %v753 = vld [vmem:[%s1 + $0x36c] sm:$0xff]
  %v754 = vld [vmem:[%s1 + $0x374] sm:$0xf]
  %v755 = vld [vmem:[%s1 + $0x378] sm:$0xff]
  %v756 = vld [vmem:[%s1 + $0x380] sm:$0xf]
  %v757 = vld [vmem:[%s1 + $0x384] sm:$0xff]
  %v758 = vld [vmem:[%s1 + $0x38c] sm:$0xf]
  %v759 = vld [vmem:[%s1 + $0x390] sm:$0xff]
  %v760 = vld [vmem:[%s1 + $0x398] sm:$0xf]
  %v761 = vld [vmem:[%s1 + $0x39c] sm:$0xff]
  %v762 = vld [vmem:[%s1 + $0x3a4] sm:$0xf]
  %v763 = vld [vmem:[%s1 + $0x3a8] sm:$0xff]
  %v764 = vld [vmem:[%s1 + $0x3b0] sm:$0xf]
  %v765 = vld [vmem:[%s1 + $0x3b4] sm:$0xff]
  %v766 = vld [vmem:[%s1 + $0x3bc] sm:$0xf]
  %v767 = vld [vmem:[%s2] sm:$0x7]
  %v769 = vlaneseq
  %v770 = vshrl.u32 %v769, 7
  %v771 = vsub.s32 0, %v770
  %v772 = vrot.slane %v767, %v771
  %v773 = vlaneseq
  %v774 = vshrl.u32 %v773, 7
  %v775 = vsub.s32 1, %v774
  %v776 = vrot.slane %v767, %v775
  %v777 = vlaneseq
  %v778 = vshrl.u32 %v777, 7
  %v779 = vsub.s32 2, %v778
  %v780 = vrot.slane %v767, %v779
  %v944 = vunpack.c.l.b16 %v607
  %v945 = vunpack.c.h.b16 %v607
  %v946 = vunpack.c.l.b16 %v608
  %v947 = vunpack.c.l.b16 %v609
  %v948 = vunpack.c.h.b16 %v609
  %v949 = vunpack.c.l.b16 %v610
  %v950 = vunpack.c.l.b16 %v611
  %v951 = vunpack.c.h.b16 %v611
  %v952 = vunpack.c.l.b16 %v612
  %v953 = vunpack.c.l.b16 %v613
  %v954 = vunpack.c.h.b16 %v613
  %v955 = vunpack.c.l.b16 %v614
  %v956 = vunpack.c.l.b16 %v615
  %v957 = vunpack.c.h.b16 %v615
  %v958 = vunpack.c.l.b16 %v616
  %v959 = vunpack.c.l.b16 %v617
  %v960 = vunpack.c.h.b16 %v617
  %v961 = vunpack.c.l.b16 %v618
  %v962 = vunpack.c.l.b16 %v619
  %v963 = vunpack.c.h.b16 %v619
  %v964 = vunpack.c.l.b16 %v620
  %v965 = vunpack.c.l.b16 %v621
  %v966 = vunpack.c.h.b16 %v621
  %v967 = vunpack.c.l.b16 %v622
  %v968 = vunpack.c.l.b16 %v623
  %v969 = vunpack.c.h.b16 %v623
  %v970 = vunpack.c.l.b16 %v624
  %v971 = vunpack.c.l.b16 %v625
  %v972 = vunpack.c.h.b16 %v625
  %v973 = vunpack.c.l.b16 %v626
  %v974 = vunpack.c.l.b16 %v627
  %v975 = vunpack.c.h.b16 %v627
  %v976 = vunpack.c.l.b16 %v628
  %v977 = vunpack.c.l.b16 %v629
  %v978 = vunpack.c.h.b16 %v629
  %v979 = vunpack.c.l.b16 %v630
  %v980 = vunpack.c.l.b16 %v631
  %v981 = vunpack.c.h.b16 %v631
  %v982 = vunpack.c.l.b16 %v632
  %v983 = vunpack.c.l.b16 %v633
  %v984 = vunpack.c.h.b16 %v633
  %v985 = vunpack.c.l.b16 %v634
  %v986 = vunpack.c.l.b16 %v635
  %v987 = vunpack.c.h.b16 %v635
  %v988 = vunpack.c.l.b16 %v636
  %v989 = vunpack.c.l.b16 %v637
  %v990 = vunpack.c.h.b16 %v637
  %v991 = vunpack.c.l.b16 %v638
  %v992 = vunpack.c.l.b16 %v639
  %v993 = vunpack.c.h.b16 %v639
  %v994 = vunpack.c.l.b16 %v640
  %v995 = vunpack.c.l.b16 %v641
  %v996 = vunpack.c.h.b16 %v641
  %v997 = vunpack.c.l.b16 %v642
  %v998 = vunpack.c.l.b16 %v643
  %v999 = vunpack.c.h.b16 %v643
  %v1000 = vunpack.c.l.b16 %v644
  %v1001 = vunpack.c.l.b16 %v645
  %v1002 = vunpack.c.h.b16 %v645
  %v1003 = vunpack.c.l.b16 %v646
  %v1004 = vunpack.c.l.b16 %v647
  %v1005 = vunpack.c.h.b16 %v647
  %v1006 = vunpack.c.l.b16 %v648
  %v1007 = vunpack.c.l.b16 %v649
  %v1008 = vunpack.c.h.b16 %v649
  %v1009 = vunpack.c.l.b16 %v650
  %v1010 = vunpack.c.l.b16 %v651
  %v1011 = vunpack.c.h.b16 %v651
  %v1012 = vunpack.c.l.b16 %v652
  %v1013 = vunpack.c.l.b16 %v653
  %v1014 = vunpack.c.h.b16 %v653
  %v1015 = vunpack.c.l.b16 %v654
  %v1016 = vunpack.c.l.b16 %v655
  %v1017 = vunpack.c.h.b16 %v655
  %v1018 = vunpack.c.l.b16 %v656
  %v1019 = vunpack.c.l.b16 %v657
  %v1020 = vunpack.c.h.b16 %v657
  %v1021 = vunpack.c.l.b16 %v658
  %v1022 = vunpack.c.l.b16 %v659
  %v1023 = vunpack.c.h.b16 %v659
  %v1024 = vunpack.c.l.b16 %v660
  %v1025 = vunpack.c.l.b16 %v661
  %v1026 = vunpack.c.h.b16 %v661
  %v1027 = vunpack.c.l.b16 %v662
  %v1028 = vunpack.c.l.b16 %v663
  %v1029 = vunpack.c.h.b16 %v663
  %v1030 = vunpack.c.l.b16 %v664
  %v1031 = vunpack.c.l.b16 %v665
  %v1032 = vunpack.c.h.b16 %v665
  %v1033 = vunpack.c.l.b16 %v666
  %v1034 = vunpack.c.l.b16 %v667
  %v1035 = vunpack.c.h.b16 %v667
  %v1036 = vunpack.c.l.b16 %v668
  %v1037 = vunpack.c.l.b16 %v669
  %v1038 = vunpack.c.h.b16 %v669
  %v1039 = vunpack.c.l.b16 %v670
  %v1040 = vunpack.c.l.b16 %v671
  %v1041 = vunpack.c.h.b16 %v671
  %v1042 = vunpack.c.l.b16 %v672
  %v1043 = vunpack.c.l.b16 %v673
  %v1044 = vunpack.c.h.b16 %v673
  %v1045 = vunpack.c.l.b16 %v674
  %v1046 = vunpack.c.l.b16 %v675
  %v1047 = vunpack.c.h.b16 %v675
  %v1048 = vunpack.c.l.b16 %v676
  %v1049 = vunpack.c.l.b16 %v677
  %v1050 = vunpack.c.h.b16 %v677
  %v1051 = vunpack.c.l.b16 %v678
  %v1052 = vunpack.c.l.b16 %v679
  %v1053 = vunpack.c.h.b16 %v679
  %v1054 = vunpack.c.l.b16 %v680
  %v1055 = vunpack.c.l.b16 %v681
  %v1056 = vunpack.c.h.b16 %v681
  %v1057 = vunpack.c.l.b16 %v682
  %v1058 = vunpack.c.l.b16 %v683
  %v1059 = vunpack.c.h.b16 %v683
  %v1060 = vunpack.c.l.b16 %v684
  %v1061 = vunpack.c.l.b16 %v685
  %v1062 = vunpack.c.h.b16 %v685
  %v1063 = vunpack.c.l.b16 %v686
  %v1064 = vunpack.c.l.b16 %v687
  %v1065 = vunpack.c.h.b16 %v687
  %v1066 = vunpack.c.l.b16 %v688
  %v1067 = vunpack.c.l.b16 %v689
  %v1068 = vunpack.c.h.b16 %v689
  %v1069 = vunpack.c.l.b16 %v690
  %v1070 = vunpack.c.l.b16 %v691
  %v1071 = vunpack.c.h.b16 %v691
  %v1072 = vunpack.c.l.b16 %v692
  %v1073 = vunpack.c.l.b16 %v693
  %v1074 = vunpack.c.h.b16 %v693
  %v1075 = vunpack.c.l.b16 %v694
  %v1076 = vunpack.c.l.b16 %v695
  %v1077 = vunpack.c.h.b16 %v695
  %v1078 = vunpack.c.l.b16 %v696
  %v1079 = vunpack.c.l.b16 %v697
  %v1080 = vunpack.c.h.b16 %v697
  %v1081 = vunpack.c.l.b16 %v698
  %v1082 = vunpack.c.l.b16 %v699
  %v1083 = vunpack.c.h.b16 %v699
  %v1084 = vunpack.c.l.b16 %v700
  %v1085 = vunpack.c.l.b16 %v701
  %v1086 = vunpack.c.h.b16 %v701
  %v1087 = vunpack.c.l.b16 %v702
  %v1088 = vunpack.c.l.b16 %v703
  %v1089 = vunpack.c.h.b16 %v703
  %v1090 = vunpack.c.l.b16 %v704
  %v1091 = vunpack.c.l.b16 %v705
  %v1092 = vunpack.c.h.b16 %v705
  %v1093 = vunpack.c.l.b16 %v706
  %v1094 = vunpack.c.l.b16 %v707
  %v1095 = vunpack.c.h.b16 %v707
  %v1096 = vunpack.c.l.b16 %v708
  %v1097 = vunpack.c.l.b16 %v709
  %v1098 = vunpack.c.h.b16 %v709
  %v1099 = vunpack.c.l.b16 %v710
  %v1100 = vunpack.c.l.b16 %v711
  %v1101 = vunpack.c.h.b16 %v711
  %v1102 = vunpack.c.l.b16 %v712
  %v1103 = vunpack.c.l.b16 %v713
  %v1104 = vunpack.c.h.b16 %v713
  %v1105 = vunpack.c.l.b16 %v714
  %v1106 = vunpack.c.l.b16 %v715
  %v1107 = vunpack.c.h.b16 %v715
  %v1108 = vunpack.c.l.b16 %v716
  %v1109 = vunpack.c.l.b16 %v717
  %v1110 = vunpack.c.h.b16 %v717
  %v1111 = vunpack.c.l.b16 %v718
  %v1112 = vunpack.c.l.b16 %v719
  %v1113 = vunpack.c.h.b16 %v719
  %v1114 = vunpack.c.l.b16 %v720
  %v1115 = vunpack.c.l.b16 %v721
  %v1116 = vunpack.c.h.b16 %v721
  %v1117 = vunpack.c.l.b16 %v722
  %v1118 = vunpack.c.l.b16 %v723
  %v1119 = vunpack.c.h.b16 %v723
  %v1120 = vunpack.c.l.b16 %v724
  %v1121 = vunpack.c.l.b16 %v725
  %v1122 = vunpack.c.h.b16 %v725
  %v1123 = vunpack.c.l.b16 %v726
  %v1124 = vunpack.c.l.b16 %v727
  %v1125 = vunpack.c.h.b16 %v727
  %v1126 = vunpack.c.l.b16 %v728
  %v1127 = vunpack.c.l.b16 %v729
  %v1128 = vunpack.c.h.b16 %v729
  %v1129 = vunpack.c.l.b16 %v730
  %v1130 = vunpack.c.l.b16 %v731
  %v1131 = vunpack.c.h.b16 %v731
  %v1132 = vunpack.c.l.b16 %v732
  %v1133 = vunpack.c.l.b16 %v733
  %v1134 = vunpack.c.h.b16 %v733
  %v1135 = vunpack.c.l.b16 %v734
  %v1136 = vunpack.c.l.b16 %v735
  %v1137 = vunpack.c.h.b16 %v735
  %v1138 = vunpack.c.l.b16 %v736
  %v1139 = vunpack.c.l.b16 %v737
  %v1140 = vunpack.c.h.b16 %v737
  %v1141 = vunpack.c.l.b16 %v738
  %v1142 = vunpack.c.l.b16 %v739
  %v1143 = vunpack.c.h.b16 %v739
  %v1144 = vunpack.c.l.b16 %v740
  %v1145 = vunpack.c.l.b16 %v741
  %v1146 = vunpack.c.h.b16 %v741
  %v1147 = vunpack.c.l.b16 %v742
  %v1148 = vunpack.c.l.b16 %v743
  %v1149 = vunpack.c.h.b16 %v743
  %v1150 = vunpack.c.l.b16 %v744
  %v1151 = vunpack.c.l.b16 %v745
  %v1152 = vunpack.c.h.b16 %v745
  %v1153 = vunpack.c.l.b16 %v746
  %v1154 = vunpack.c.l.b16 %v747
  %v1155 = vunpack.c.h.b16 %v747
  %v1156 = vunpack.c.l.b16 %v748
  %v1157 = vunpack.c.l.b16 %v749
  %v1158 = vunpack.c.h.b16 %v749
  %v1159 = vunpack.c.l.b16 %v750
  %v1160 = vunpack.c.l.b16 %v751
  %v1161 = vunpack.c.h.b16 %v751
  %v1162 = vunpack.c.l.b16 %v752
  %v1163 = vunpack.c.l.b16 %v753
  %v1164 = vunpack.c.h.b16 %v753
  %v1165 = vunpack.c.l.b16 %v754
  %v1166 = vunpack.c.l.b16 %v755
  %v1167 = vunpack.c.h.b16 %v755
  %v1168 = vunpack.c.l.b16 %v756
  %v1169 = vunpack.c.l.b16 %v757
  %v1170 = vunpack.c.h.b16 %v757
  %v1171 = vunpack.c.l.b16 %v758
  %v1172 = vunpack.c.l.b16 %v759
  %v1173 = vunpack.c.h.b16 %v759
  %v1174 = vunpack.c.l.b16 %v760
  %v1175 = vunpack.c.l.b16 %v761
  %v1176 = vunpack.c.h.b16 %v761
  %v1177 = vunpack.c.l.b16 %v762
  %v1178 = vunpack.c.l.b16 %v763
  %v1179 = vunpack.c.h.b16 %v763
  %v1180 = vunpack.c.l.b16 %v764
  %v1181 = vunpack.c.l.b16 %v765
  %v1182 = vunpack.c.h.b16 %v765
  %v1183 = vunpack.c.l.b16 %v766
  %v1184 = vpack.c.b16 %v947, %v944
  %v1185 = vpack.c.b16 %v948, %v945
  %v1186 = vpack.c.b16 %v949, %v946
  %v1187 = vpack.c.b16 %v953, %v950
  %v1188 = vpack.c.b16 %v954, %v951
  %v1189 = vpack.c.b16 %v955, %v952
  %v1190 = vpack.c.b16 %v959, %v956
  %v1191 = vpack.c.b16 %v960, %v957
  %v1192 = vpack.c.b16 %v961, %v958
  %v1193 = vpack.c.b16 %v965, %v962
  %v1194 = vpack.c.b16 %v966, %v963
  %v1195 = vpack.c.b16 %v967, %v964
  %v1196 = vpack.c.b16 %v971, %v968
  %v1197 = vpack.c.b16 %v972, %v969
  %v1198 = vpack.c.b16 %v973, %v970
  %v1199 = vpack.c.b16 %v977, %v974
  %v1200 = vpack.c.b16 %v978, %v975
  %v1201 = vpack.c.b16 %v979, %v976
  %v1202 = vpack.c.b16 %v983, %v980
  %v1203 = vpack.c.b16 %v984, %v981
  %v1204 = vpack.c.b16 %v985, %v982
  %v1205 = vpack.c.b16 %v989, %v986
  %v1206 = vpack.c.b16 %v990, %v987
  %v1207 = vpack.c.b16 %v991, %v988
  %v1208 = vpack.c.b16 %v995, %v992
  %v1209 = vpack.c.b16 %v996, %v993
  %v1210 = vpack.c.b16 %v997, %v994
  %v1211 = vpack.c.b16 %v1001, %v998
  %v1212 = vpack.c.b16 %v1002, %v999
  %v1213 = vpack.c.b16 %v1003, %v1000
  %v1214 = vpack.c.b16 %v1007, %v1004
  %v1215 = vpack.c.b16 %v1008, %v1005
  %v1216 = vpack.c.b16 %v1009, %v1006
  %v1217 = vpack.c.b16 %v1013, %v1010
  %v1218 = vpack.c.b16 %v1014, %v1011
  %v1219 = vpack.c.b16 %v1015, %v1012
  %v1220 = vpack.c.b16 %v1019, %v1016
  %v1221 = vpack.c.b16 %v1020, %v1017
  %v1222 = vpack.c.b16 %v1021, %v1018
  %v1223 = vpack.c.b16 %v1025, %v1022
  %v1224 = vpack.c.b16 %v1026, %v1023
  %v1225 = vpack.c.b16 %v1027, %v1024
  %v1226 = vpack.c.b16 %v1031, %v1028
  %v1227 = vpack.c.b16 %v1032, %v1029
  %v1228 = vpack.c.b16 %v1033, %v1030
  %v1229 = vpack.c.b16 %v1037, %v1034
  %v1230 = vpack.c.b16 %v1038, %v1035
  %v1231 = vpack.c.b16 %v1039, %v1036
  %v1232 = vpack.c.b16 %v1043, %v1040
  %v1233 = vpack.c.b16 %v1044, %v1041
  %v1234 = vpack.c.b16 %v1045, %v1042
  %v1235 = vpack.c.b16 %v1049, %v1046
  %v1236 = vpack.c.b16 %v1050, %v1047
  %v1237 = vpack.c.b16 %v1051, %v1048
  %v1238 = vpack.c.b16 %v1055, %v1052
  %v1239 = vpack.c.b16 %v1056, %v1053
  %v1240 = vpack.c.b16 %v1057, %v1054
  %v1241 = vpack.c.b16 %v1061, %v1058
  %v1242 = vpack.c.b16 %v1062, %v1059
  %v1243 = vpack.c.b16 %v1063, %v1060
  %v1244 = vpack.c.b16 %v1067, %v1064
  %v1245 = vpack.c.b16 %v1068, %v1065
  %v1246 = vpack.c.b16 %v1069, %v1066
  %v1247 = vpack.c.b16 %v1073, %v1070
  %v1248 = vpack.c.b16 %v1074, %v1071
  %v1249 = vpack.c.b16 %v1075, %v1072
  %v1250 = vpack.c.b16 %v1079, %v1076
  %v1251 = vpack.c.b16 %v1080, %v1077
  %v1252 = vpack.c.b16 %v1081, %v1078
  %v1253 = vpack.c.b16 %v1085, %v1082
  %v1254 = vpack.c.b16 %v1086, %v1083
  %v1255 = vpack.c.b16 %v1087, %v1084
  %v1256 = vpack.c.b16 %v1091, %v1088
  %v1257 = vpack.c.b16 %v1092, %v1089
  %v1258 = vpack.c.b16 %v1093, %v1090
  %v1259 = vpack.c.b16 %v1097, %v1094
  %v1260 = vpack.c.b16 %v1098, %v1095
  %v1261 = vpack.c.b16 %v1099, %v1096
  %v1262 = vpack.c.b16 %v1103, %v1100
  %v1263 = vpack.c.b16 %v1104, %v1101
  %v1264 = vpack.c.b16 %v1105, %v1102
  %v1265 = vpack.c.b16 %v1109, %v1106
  %v1266 = vpack.c.b16 %v1110, %v1107
  %v1267 = vpack.c.b16 %v1111, %v1108
  %v1268 = vpack.c.b16 %v1115, %v1112
  %v1269 = vpack.c.b16 %v1116, %v1113
  %v1270 = vpack.c.b16 %v1117, %v1114
  %v1271 = vpack.c.b16 %v1121, %v1118
  %v1272 = vpack.c.b16 %v1122, %v1119
  %v1273 = vpack.c.b16 %v1123, %v1120
  %v1274 = vpack.c.b16 %v1127, %v1124
  %v1275 = vpack.c.b16 %v1128, %v1125
  %v1276 = vpack.c.b16 %v1129, %v1126
  %v1277 = vpack.c.b16 %v1133, %v1130
  %v1278 = vpack.c.b16 %v1134, %v1131
  %v1279 = vpack.c.b16 %v1135, %v1132
  %v1280 = vpack.c.b16 %v1139, %v1136
  %v1281 = vpack.c.b16 %v1140, %v1137
  %v1282 = vpack.c.b16 %v1141, %v1138
  %v1283 = vpack.c.b16 %v1145, %v1142
  %v1284 = vpack.c.b16 %v1146, %v1143
  %v1285 = vpack.c.b16 %v1147, %v1144
  %v1286 = vpack.c.b16 %v1151, %v1148
  %v1287 = vpack.c.b16 %v1152, %v1149
  %v1288 = vpack.c.b16 %v1153, %v1150
  %v1289 = vpack.c.b16 %v1157, %v1154
  %v1290 = vpack.c.b16 %v1158, %v1155
  %v1291 = vpack.c.b16 %v1159, %v1156
  %v1292 = vpack.c.b16 %v1163, %v1160
  %v1293 = vpack.c.b16 %v1164, %v1161
  %v1294 = vpack.c.b16 %v1165, %v1162
  %v1295 = vpack.c.b16 %v1169, %v1166
  %v1296 = vpack.c.b16 %v1170, %v1167
  %v1297 = vpack.c.b16 %v1171, %v1168
  %v1298 = vpack.c.b16 %v1175, %v1172
  %v1299 = vpack.c.b16 %v1176, %v1173
  %v1300 = vpack.c.b16 %v1177, %v1174
  %v1301 = vpack.c.b16 %v1181, %v1178
  %v1302 = vpack.c.b16 %v1182, %v1179
  %v1303 = vpack.c.b16 %v1183, %v1180
  %1424 = vmatprep.subr.bf16.mxu0 %v1185
  %1425 = vmatpush1.bf16.msra.mxu0 %v1184
  %1426 = vmatprep.subr.bf16.mxu0 %v1188
  %1427 = vmatpush1.bf16.msra.mxu0 %v1187
  %1428 = vmatprep.subr.bf16.mxu0 %v1191
  %1429 = vmatpush1.bf16.msra.mxu0 %v1190
  %1430 = vmatprep.subr.bf16.mxu0 %v1194
  %1431 = vmatpush1.bf16.msra.mxu0 %v1193
  %1432 = vmatprep.subr.bf16.mxu0 %v1197
  %1433 = vmatpush1.bf16.msra.mxu0 %v1196
  %1434 = vmatprep.subr.bf16.mxu0 %v1200
  %1435 = vmatpush1.bf16.msra.mxu0 %v1199
  %1436 = vmatprep.subr.bf16.mxu0 %v1203
  %1437 = vmatpush1.bf16.msra.mxu0 %v1202
  %1438 = vmatprep.subr.bf16.mxu0 %v1206
  %1439 = vmatpush1.bf16.msra.mxu0 %v1205
  %1440 = vmatprep.subr.bf16.mxu0 %v1209
  %1441 = vmatpush1.bf16.msra.mxu0 %v1208
  %1442 = vmatprep.subr.bf16.mxu0 %v1212
  %1443 = vmatpush1.bf16.msra.mxu0 %v1211
  %1444 = vmatprep.subr.bf16.mxu0 %v1215
  %1445 = vmatpush1.bf16.msra.mxu0 %v1214
  %1446 = vmatprep.subr.bf16.mxu0 %v1218
  %1447 = vmatpush1.bf16.msra.mxu0 %v1217
  %1448 = vmatprep.subr.bf16.mxu0 %v1221
  %1449 = vmatpush1.bf16.msra.mxu0 %v1220
  %1450 = vmatprep.subr.bf16.mxu0 %v1224
  %1451 = vmatpush1.bf16.msra.mxu0 %v1223
  %1452 = vmatprep.subr.bf16.mxu0 %v1227
  %1453 = vmatpush1.bf16.msra.mxu0 %v1226
  %1454 = vmatprep.subr.bf16.mxu0 %v1230
  %1455 = vmatpush1.bf16.msra.mxu0 %v1229
  %1456 = vmatprep.mubr.bf16.mxu0 %v588
  %1457 = vmatmul.mubr.bf16.gmra.mrb[0].mxu0 %v587
  %v1458 = vpop.f32.mrb[0].mxu0
  %v1459 = vadd.f32 %v772, %v1458
  %v1460 = vpop.f32.mrb[0].mxu0
  %v1461 = vadd.f32 %v776, %v1460
  %v1462 = vpop.f32.mrb[0].mxu0
  %v1463 = vadd.f32 %v772, %v1462
  %v1464 = vpop.f32.mrb[0].mxu0
  %v1465 = vadd.f32 %v776, %v1464
  %1466 = vmatprep.mubr.bf16.mxu0 %v593
  %1467 = vmatmul.mubr.bf16.gmra.mrb[0].mxu0 %v592
  %v1468 = vpop.f32.mrb[0].mxu0
  %v1469 = vadd.f32 %v772, %v1468
  %v1470 = vpop.f32.mrb[0].mxu0
  %v1471 = vadd.f32 %v776, %v1470
  %v1472 = vpop.f32.mrb[0].mxu0
  %v1473 = vadd.f32 %v772, %v1472
  %v1474 = vpop.f32.mrb[0].mxu0
  %v1475 = vadd.f32 %v776, %v1474
  %1476 = vmatprep.mubr.bf16.mxu0 %v598
  %1477 = vmatmul.mubr.bf16.gmra.mrb[0].mxu0 %v597
  %v1478 = vpop.f32.mrb[0].mxu0
  %v1479 = vadd.f32 %v772, %v1478
  %v1480 = vpop.f32.mrb[0].mxu0
  %v1481 = vadd.f32 %v776, %v1480
  %v1482 = vpop.f32.mrb[0].mxu0
  %v1483 = vadd.f32 %v772, %v1482
  %v1484 = vpop.f32.mrb[0].mxu0
  %v1485 = vadd.f32 %v776, %v1484
  %1486 = vmatprep.mubr.bf16.mxu0 %v603
  %1487 = vmatmul.mubr.bf16.gmra.mrb[0].mxu0 %v602
  %v1488 = vpop.f32.mrb[0].mxu0
  %v1489 = vadd.f32 %v772, %v1488
  %v1490 = vpop.f32.mrb[0].mxu0
  %v1491 = vadd.f32 %v776, %v1490
  %v1492 = vpop.f32.mrb[0].mxu0
  %v1493 = vadd.f32 %v772, %v1492
  %v1494 = vpop.f32.mrb[0].mxu0
  %v1495 = vadd.f32 %v776, %v1494
  %1496 = vdwg.mxu0
  %1497 = vmatprep.subr.bf16.mxu0 %v1233
  %1498 = vmatpush1.bf16.msra.mxu0 %v1232
  %1499 = vmatprep.subr.bf16.mxu0 %v1236
  %1500 = vmatpush1.bf16.msra.mxu0 %v1235
  %1501 = vmatprep.subr.bf16.mxu0 %v1239
  %1502 = vmatpush1.bf16.msra.mxu0 %v1238
  %1503 = vmatprep.subr.bf16.mxu0 %v1242
  %1504 = vmatpush1.bf16.msra.mxu0 %v1241
  %1505 = vmatprep.subr.bf16.mxu0 %v1245
  %1506 = vmatpush1.bf16.msra.mxu0 %v1244
  %1507 = vmatprep.subr.bf16.mxu0 %v1248
  %1508 = vmatpush1.bf16.msra.mxu0 %v1247
  %1509 = vmatprep.subr.bf16.mxu0 %v1251
  %1510 = vmatpush1.bf16.msra.mxu0 %v1250
  %1511 = vmatprep.subr.bf16.mxu0 %v1254
  %1512 = vmatpush1.bf16.msra.mxu0 %v1253
  %1513 = vmatprep.subr.bf16.mxu0 %v1257
  %1514 = vmatpush1.bf16.msra.mxu0 %v1256
  %1515 = vmatprep.subr.bf16.mxu0 %v1260
  %1516 = vmatpush1.bf16.msra.mxu0 %v1259
  %1517 = vmatprep.subr.bf16.mxu0 %v1263
  %1518 = vmatpush1.bf16.msra.mxu0 %v1262
  %1519 = vmatprep.subr.bf16.mxu0 %v1266
  %1520 = vmatpush1.bf16.msra.mxu0 %v1265
  %1521 = vmatprep.subr.bf16.mxu0 %v1269
  %1522 = vmatpush1.bf16.msra.mxu0 %v1268
  %1523 = vmatprep.subr.bf16.mxu0 %v1272
  %1524 = vmatpush1.bf16.msra.mxu0 %v1271
  %1525 = vmatprep.subr.bf16.mxu0 %v1275
  %1526 = vmatpush1.bf16.msra.mxu0 %v1274
  %1527 = vmatprep.subr.bf16.mxu0 %v1278
  %1528 = vmatpush1.bf16.msra.mxu0 %v1277
  %1529 = vmatprep.mubr.bf16.mxu0 %v590
  %1530 = vmatmul.mubr.bf16.gmra.mrb[0].mxu0 %v589
  %v1531 = vpop.f32.mrb[0].mxu0
  %v1532 = vadd.f32 %v1459, %v1531
  %v1533 = vpop.f32.mrb[0].mxu0
  %v1534 = vadd.f32 %v1461, %v1533
  %v1535 = vpop.f32.mrb[0].mxu0
  %v1536 = vadd.f32 %v1463, %v1535
  %v1537 = vpop.f32.mrb[0].mxu0
  %v1538 = vadd.f32 %v1465, %v1537
  %1539 = vmatprep.mubr.bf16.mxu0 %v595
  %1540 = vmatmul.mubr.bf16.gmra.mrb[0].mxu0 %v594
  %v1541 = vpop.f32.mrb[0].mxu0
  %v1542 = vadd.f32 %v1469, %v1541
  %v1543 = vpop.f32.mrb[0].mxu0
  %v1544 = vadd.f32 %v1471, %v1543
  %v1545 = vpop.f32.mrb[0].mxu0
  %v1546 = vadd.f32 %v1473, %v1545
  %v1547 = vpop.f32.mrb[0].mxu0
  %v1548 = vadd.f32 %v1475, %v1547
  %1549 = vmatprep.mubr.bf16.mxu0 %v600
  %1550 = vmatmul.mubr.bf16.gmra.mrb[0].mxu0 %v599
  %v1551 = vpop.f32.mrb[0].mxu0
  %v1552 = vadd.f32 %v1479, %v1551
  %v1553 = vpop.f32.mrb[0].mxu0
  %v1554 = vadd.f32 %v1481, %v1553
  %v1555 = vpop.f32.mrb[0].mxu0
  %v1556 = vadd.f32 %v1483, %v1555
  %v1557 = vpop.f32.mrb[0].mxu0
  %v1558 = vadd.f32 %v1485, %v1557
  %1559 = vmatprep.mubr.bf16.mxu0 %v605
  %1560 = vmatmul.mubr.bf16.gmra.mrb[0].mxu0 %v604
  %v1561 = vpop.f32.mrb[0].mxu0
  %v1562 = vadd.f32 %v1489, %v1561
  %v1563 = vpop.f32.mrb[0].mxu0
  %v1564 = vadd.f32 %v1491, %v1563
  %v1565 = vpop.f32.mrb[0].mxu0
  %v1566 = vadd.f32 %v1493, %v1565
  %v1567 = vpop.f32.mrb[0].mxu0
  %v1568 = vadd.f32 %v1495, %v1567
  %1569 = vdwg.mxu0
  %1570 = vmatprep.subr.bf16.mxu0 %v1281
  %1571 = vmatpush1.bf16.msra.mxu0 %v1280
  %1572 = vmatprep.subr.bf16.mxu0 %v1284
  %1573 = vmatpush1.bf16.msra.mxu0 %v1283
  %1574 = vmatprep.subr.bf16.mxu0 %v1287
  %1575 = vmatpush1.bf16.msra.mxu0 %v1286
  %1576 = vmatprep.subr.bf16.mxu0 %v1290
  %1577 = vmatpush1.bf16.msra.mxu0 %v1289
  %1578 = vmatprep.subr.bf16.mxu0 %v1293
  %1579 = vmatpush1.bf16.msra.mxu0 %v1292
  %1580 = vmatprep.subr.bf16.mxu0 %v1296
  %1581 = vmatpush1.bf16.msra.mxu0 %v1295
  %1582 = vmatprep.subr.bf16.mxu0 %v1299
  %1583 = vmatpush1.bf16.msra.mxu0 %v1298
  %1584 = vmatprep.subr.bf16.mxu0 %v1302
  %1585 = vmatpush1.bf16.msra.mxu0 %v1301
  %1586 = vmatprep.subr.bf16.mxu0 0
  %1587 = vmatpush1.bf16.msra.mxu0 0
  %1588 = vmatprep.subr.bf16.mxu0 0
  %1589 = vmatpush1.bf16.msra.mxu0 0
  %1590 = vmatprep.subr.bf16.mxu0 0
  %1591 = vmatpush1.bf16.msra.mxu0 0
  %1592 = vmatprep.subr.bf16.mxu0 0
  %1593 = vmatpush1.bf16.msra.mxu0 0
  %1594 = vmatprep.subr.bf16.mxu0 0
  %1595 = vmatpush1.bf16.msra.mxu0 0
  %1596 = vmatprep.subr.bf16.mxu0 0
  %1597 = vmatpush1.bf16.msra.mxu0 0
  %1598 = vmatprep.subr.bf16.mxu0 0
  %1599 = vmatpush1.bf16.msra.mxu0 0
  %1600 = vmatprep.subr.bf16.mxu0 0
  %1601 = vmatpush1.bf16.msra.mxu0 0
  %1602 = vmatprep.mubr.bf16.mxu0 0
  %1603 = vmatmul.mubr.bf16.gmra.mrb[0].mxu0 %v591
  %v1604 = vpop.f32.mrb[0].mxu0
  %v1605 = vadd.f32 %v1532, %v1604
  %v1606 = vpop.f32.mrb[0].mxu0
  %v1607 = vadd.f32 %v1534, %v1606
  %v1608 = vpop.f32.mrb[0].mxu0
  %v1609 = vadd.f32 %v1536, %v1608
  %v1610 = vpop.f32.mrb[0].mxu0
  %v1611 = vadd.f32 %v1538, %v1610
  %1612 = vmatprep.mubr.bf16.mxu0 0
  %1613 = vmatmul.mubr.bf16.gmra.mrb[0].mxu0 %v596
  %v1614 = vpop.f32.mrb[0].mxu0
  %v1615 = vadd.f32 %v1542, %v1614
  %v1616 = vpop.f32.mrb[0].mxu0
  %v1617 = vadd.f32 %v1544, %v1616
  %v1618 = vpop.f32.mrb[0].mxu0
  %v1619 = vadd.f32 %v1546, %v1618
  %v1620 = vpop.f32.mrb[0].mxu0
  %v1621 = vadd.f32 %v1548, %v1620
  %1622 = vmatprep.mubr.bf16.mxu0 0
  %1623 = vmatmul.mubr.bf16.gmra.mrb[0].mxu0 %v601
  %v1624 = vpop.f32.mrb[0].mxu0
  %v1625 = vadd.f32 %v1552, %v1624
  %v1626 = vpop.f32.mrb[0].mxu0
  %v1627 = vadd.f32 %v1554, %v1626
  %v1628 = vpop.f32.mrb[0].mxu0
  %v1629 = vadd.f32 %v1556, %v1628
  %v1630 = vpop.f32.mrb[0].mxu0
  %v1631 = vadd.f32 %v1558, %v1630
  %1632 = vmatprep.mubr.bf16.mxu0 0
  %1633 = vmatmul.mubr.bf16.gmra.mrb[0].mxu0 %v606
  %v1634 = vpop.f32.mrb[0].mxu0
  %v1635 = vadd.f32 %v1562, %v1634
  %v1636 = vpop.f32.mrb[0].mxu0
  %v1637 = vadd.f32 %v1564, %v1636
  %v1638 = vpop.f32.mrb[0].mxu0
  %v1639 = vadd.f32 %v1566, %v1638
  %v1640 = vpop.f32.mrb[0].mxu0
  %v1641 = vadd.f32 %v1568, %v1640
  %1642 = vdwg.mxu0
  %1643 = vmatprep.subr.bf16.mxu0 0
  %1644 = vmatpush1.bf16.msra.mxu0 %v1186
  %1645 = vmatprep.subr.bf16.mxu0 0
  %1646 = vmatpush1.bf16.msra.mxu0 %v1189
  %1647 = vmatprep.subr.bf16.mxu0 0
  %1648 = vmatpush1.bf16.msra.mxu0 %v1192
  %1649 = vmatprep.subr.bf16.mxu0 0
  %1650 = vmatpush1.bf16.msra.mxu0 %v1195
  %1651 = vmatprep.subr.bf16.mxu0 0
  %1652 = vmatpush1.bf16.msra.mxu0 %v1198
  %1653 = vmatprep.subr.bf16.mxu0 0
  %1654 = vmatpush1.bf16.msra.mxu0 %v1201
  %1655 = vmatprep.subr.bf16.mxu0 0
  %1656 = vmatpush1.bf16.msra.mxu0 %v1204
  %1657 = vmatprep.subr.bf16.mxu0 0
  %1658 = vmatpush1.bf16.msra.mxu0 %v1207
  %1659 = vmatprep.subr.bf16.mxu0 0
  %1660 = vmatpush1.bf16.msra.mxu0 %v1210
  %1661 = vmatprep.subr.bf16.mxu0 0
  %1662 = vmatpush1.bf16.msra.mxu0 %v1213
  %1663 = vmatprep.subr.bf16.mxu0 0
  %1664 = vmatpush1.bf16.msra.mxu0 %v1216
  %1665 = vmatprep.subr.bf16.mxu0 0
  %1666 = vmatpush1.bf16.msra.mxu0 %v1219
  %1667 = vmatprep.subr.bf16.mxu0 0
  %1668 = vmatpush1.bf16.msra.mxu0 %v1222
  %1669 = vmatprep.subr.bf16.mxu0 0
  %1670 = vmatpush1.bf16.msra.mxu0 %v1225
  %1671 = vmatprep.subr.bf16.mxu0 0
  %1672 = vmatpush1.bf16.msra.mxu0 %v1228
  %1673 = vmatprep.subr.bf16.mxu0 0
  %1674 = vmatpush1.bf16.msra.mxu0 %v1231
  %1675 = vmatprep.mubr.bf16.mxu0 %v588
  %1676 = vmatmul.mubr.bf16.gmra.mrb[0].mxu0 %v587
  %v1677 = vpop.f32.mrb[0].mxu0
  %v1678 = vadd.f32 %v780, %v1677
  %v1679 = vpop.f32.mrb[0].mxu0
  %v1680 = vpop.f32.mrb[0].mxu0
  %v1681 = vadd.f32 %v780, %v1680
  %v1682 = vpop.f32.mrb[0].mxu0
  %1683 = vmatprep.mubr.bf16.mxu0 %v593
  %1684 = vmatmul.mubr.bf16.gmra.mrb[0].mxu0 %v592
  %v1685 = vpop.f32.mrb[0].mxu0
  %v1686 = vadd.f32 %v780, %v1685
  %v1687 = vpop.f32.mrb[0].mxu0
  %v1688 = vpop.f32.mrb[0].mxu0
  %v1689 = vadd.f32 %v780, %v1688
  %v1690 = vpop.f32.mrb[0].mxu0
  %1691 = vmatprep.mubr.bf16.mxu0 %v598
  %1692 = vmatmul.mubr.bf16.gmra.mrb[0].mxu0 %v597
  %v1693 = vpop.f32.mrb[0].mxu0
  %v1694 = vadd.f32 %v780, %v1693
  %v1695 = vpop.f32.mrb[0].mxu0
  %v1696 = vpop.f32.mrb[0].mxu0
  %v1697 = vadd.f32 %v780, %v1696
  %v1698 = vpop.f32.mrb[0].mxu0
  %1699 = vmatprep.mubr.bf16.mxu0 %v603
  %1700 = vmatmul.mubr.bf16.gmra.mrb[0].mxu0 %v602
  %v1701 = vpop.f32.mrb[0].mxu0
  %v1702 = vadd.f32 %v780, %v1701
  %v1703 = vpop.f32.mrb[0].mxu0
  %v1704 = vpop.f32.mrb[0].mxu0
  %v1705 = vadd.f32 %v780, %v1704
  %v1706 = vpop.f32.mrb[0].mxu0
  %1707 = vdwg.mxu0
  %1708 = vmatprep.subr.bf16.mxu0 0
  %1709 = vmatpush1.bf16.msra.mxu0 %v1234
  %1710 = vmatprep.subr.bf16.mxu0 0
  %1711 = vmatpush1.bf16.msra.mxu0 %v1237
  %1712 = vmatprep.subr.bf16.mxu0 0
  %1713 = vmatpush1.bf16.msra.mxu0 %v1240
  %1714 = vmatprep.subr.bf16.mxu0 0
  %1715 = vmatpush1.bf16.msra.mxu0 %v1243
  %1716 = vmatprep.subr.bf16.mxu0 0
  %1717 = vmatpush1.bf16.msra.mxu0 %v1246
  %1718 = vmatprep.subr.bf16.mxu0 0
  %1719 = vmatpush1.bf16.msra.mxu0 %v1249
  %1720 = vmatprep.subr.bf16.mxu0 0
  %1721 = vmatpush1.bf16.msra.mxu0 %v1252
  %1722 = vmatprep.subr.bf16.mxu0 0
  %1723 = vmatpush1.bf16.msra.mxu0 %v1255
  %1724 = vmatprep.subr.bf16.mxu0 0
  %1725 = vmatpush1.bf16.msra.mxu0 %v1258
  %1726 = vmatprep.subr.bf16.mxu0 0
  %1727 = vmatpush1.bf16.msra.mxu0 %v1261
  %1728 = vmatprep.subr.bf16.mxu0 0
  %1729 = vmatpush1.bf16.msra.mxu0 %v1264
  %1730 = vmatprep.subr.bf16.mxu0 0
  %1731 = vmatpush1.bf16.msra.mxu0 %v1267
  %1732 = vmatprep.subr.bf16.mxu0 0
  %1733 = vmatpush1.bf16.msra.mxu0 %v1270
  %1734 = vmatprep.subr.bf16.mxu0 0
  %1735 = vmatpush1.bf16.msra.mxu0 %v1273
  %1736 = vmatprep.subr.bf16.mxu0 0
  %1737 = vmatpush1.bf16.msra.mxu0 %v1276
  %1738 = vmatprep.subr.bf16.mxu0 0
  %1739 = vmatpush1.bf16.msra.mxu0 %v1279
  %1740 = vmatprep.mubr.bf16.mxu0 %v590
  %1741 = vmatmul.mubr.bf16.gmra.mrb[0].mxu0 %v589
  %v1742 = vpop.f32.mrb[0].mxu0
  %v1743 = vadd.f32 %v1678, %v1742
  %v1744 = vpop.f32.mrb[0].mxu0
  %v1745 = vpop.f32.mrb[0].mxu0
  %v1746 = vadd.f32 %v1681, %v1745
  %v1747 = vpop.f32.mrb[0].mxu0
  %1748 = vmatprep.mubr.bf16.mxu0 %v595
  %1749 = vmatmul.mubr.bf16.gmra.mrb[0].mxu0 %v594
  %v1750 = vpop.f32.mrb[0].mxu0
  %v1751 = vadd.f32 %v1686, %v1750
  %v1752 = vpop.f32.mrb[0].mxu0
  %v1753 = vpop.f32.mrb[0].mxu0
  %v1754 = vadd.f32 %v1689, %v1753
  %v1755 = vpop.f32.mrb[0].mxu0
  %1756 = vmatprep.mubr.bf16.mxu0 %v600
  %1757 = vmatmul.mubr.bf16.gmra.mrb[0].mxu0 %v599
  %v1758 = vpop.f32.mrb[0].mxu0
  %v1759 = vadd.f32 %v1694, %v1758
  %v1760 = vpop.f32.mrb[0].mxu0
  %v1761 = vpop.f32.mrb[0].mxu0
  %v1762 = vadd.f32 %v1697, %v1761
  %v1763 = vpop.f32.mrb[0].mxu0
  %1764 = vmatprep.mubr.bf16.mxu0 %v605
  %1765 = vmatmul.mubr.bf16.gmra.mrb[0].mxu0 %v604
  %v1766 = vpop.f32.mrb[0].mxu0
  %v1767 = vadd.f32 %v1702, %v1766
  %v1768 = vpop.f32.mrb[0].mxu0
  %v1769 = vpop.f32.mrb[0].mxu0
  %v1770 = vadd.f32 %v1705, %v1769
  %v1771 = vpop.f32.mrb[0].mxu0
  %1772 = vdwg.mxu0
  %1773 = vmatprep.subr.bf16.mxu0 0
  %1774 = vmatpush1.bf16.msra.mxu0 %v1282
  %1775 = vmatprep.subr.bf16.mxu0 0
  %1776 = vmatpush1.bf16.msra.mxu0 %v1285
  %1777 = vmatprep.subr.bf16.mxu0 0
  %1778 = vmatpush1.bf16.msra.mxu0 %v1288
  %1779 = vmatprep.subr.bf16.mxu0 0
  %1780 = vmatpush1.bf16.msra.mxu0 %v1291
  %1781 = vmatprep.subr.bf16.mxu0 0
  %1782 = vmatpush1.bf16.msra.mxu0 %v1294
  %1783 = vmatprep.subr.bf16.mxu0 0
  %1784 = vmatpush1.bf16.msra.mxu0 %v1297
  %1785 = vmatprep.subr.bf16.mxu0 0
  %1786 = vmatpush1.bf16.msra.mxu0 %v1300
  %1787 = vmatprep.subr.bf16.mxu0 0
  %1788 = vmatpush1.bf16.msra.mxu0 %v1303
  %1789 = vmatprep.subr.bf16.mxu0 0
  %1790 = vmatpush1.bf16.msra.mxu0 0
  %1791 = vmatprep.subr.bf16.mxu0 0
  %1792 = vmatpush1.bf16.msra.mxu0 0
  %1793 = vmatprep.subr.bf16.mxu0 0
  %1794 = vmatpush1.bf16.msra.mxu0 0
  %1795 = vmatprep.subr.bf16.mxu0 0
  %1796 = vmatpush1.bf16.msra.mxu0 0
  %1797 = vmatprep.subr.bf16.mxu0 0
  %1798 = vmatpush1.bf16.msra.mxu0 0
  %1799 = vmatprep.subr.bf16.mxu0 0
  %1800 = vmatpush1.bf16.msra.mxu0 0
  %1801 = vmatprep.subr.bf16.mxu0 0
  %1802 = vmatpush1.bf16.msra.mxu0 0
  %1803 = vmatprep.subr.bf16.mxu0 0
  %1804 = vmatpush1.bf16.msra.mxu0 0
  %1805 = vmatprep.mubr.bf16.mxu0 0
  %1806 = vmatmul.mubr.bf16.gmra.mrb[0].mxu0 %v591
  %v1807 = vpop.f32.mrb[0].mxu0
  %v1808 = vadd.f32 %v1743, %v1807
  %v1809 = vpop.f32.mrb[0].mxu0
  %v1810 = vpop.f32.mrb[0].mxu0
  %v1811 = vadd.f32 %v1746, %v1810
  %v1812 = vpop.f32.mrb[0].mxu0
  %1813 = vmatprep.mubr.bf16.mxu0 0
  %1814 = vmatmul.mubr.bf16.gmra.mrb[0].mxu0 %v596
  %v1815 = vpop.f32.mrb[0].mxu0
  %v1816 = vadd.f32 %v1751, %v1815
  %v1817 = vpop.f32.mrb[0].mxu0
  %v1818 = vpop.f32.mrb[0].mxu0
  %v1819 = vadd.f32 %v1754, %v1818
  %v1820 = vpop.f32.mrb[0].mxu0
  %1821 = vmatprep.mubr.bf16.mxu0 0
  %1822 = vmatmul.mubr.bf16.gmra.mrb[0].mxu0 %v601
  %v1823 = vpop.f32.mrb[0].mxu0
  %v1824 = vadd.f32 %v1759, %v1823
  %v1825 = vpop.f32.mrb[0].mxu0
  %v1826 = vpop.f32.mrb[0].mxu0
  %v1827 = vadd.f32 %v1762, %v1826
  %v1828 = vpop.f32.mrb[0].mxu0
  %1829 = vmatprep.mubr.bf16.mxu0 0
  %1830 = vmatmul.mubr.bf16.gmra.mrb[0].mxu0 %v606
  %v1831 = vpop.f32.mrb[0].mxu0
  %v1832 = vadd.f32 %v1767, %v1831
  %v1833 = vpop.f32.mrb[0].mxu0
  %v1834 = vpop.f32.mrb[0].mxu0
  %v1835 = vadd.f32 %v1770, %v1834
  %v1836 = vpop.f32.mrb[0].mxu0
  %1837 = vdwg.mxu0
  %v1838 = vmax.f32 %v1605, 0.0
  %v1839 = vmax.f32 %v1607, 0.0
  %v1840 = vmax.f32 %v1808, 0.0
  %v1841 = vmax.f32 %v1609, 0.0
  %v1842 = vmax.f32 %v1611, 0.0
  %v1843 = vmax.f32 %v1811, 0.0
  %v1844 = vmax.f32 %v1615, 0.0
  %v1845 = vmax.f32 %v1617, 0.0
  %v1846 = vmax.f32 %v1816, 0.0
  %v1847 = vmax.f32 %v1619, 0.0
  %v1848 = vmax.f32 %v1621, 0.0
  %v1849 = vmax.f32 %v1819, 0.0
  %v1850 = vmax.f32 %v1625, 0.0
  %v1851 = vmax.f32 %v1627, 0.0
  %v1852 = vmax.f32 %v1824, 0.0
  %v1853 = vmax.f32 %v1629, 0.0
  %v1854 = vmax.f32 %v1631, 0.0
  %v1855 = vmax.f32 %v1827, 0.0
  %v1856 = vmax.f32 %v1635, 0.0
  %v1857 = vmax.f32 %v1637, 0.0
  %v1858 = vmax.f32 %v1832, 0.0
  %v1859 = vmax.f32 %v1639, 0.0
  %v1860 = vmax.f32 %v1641, 0.0
  %v1861 = vmax.f32 %v1835, 0.0
  %v1862 = vlaneseq
  %v1863 = vshrl.u32 %v1862, 7
  %v1864 = vlaneseq
  %v1865 = vand.u32 %v1864, 127
  %v1866 = vadd.s32 %v1865, 128
  %v1867 = vadd.s32 %v1865, 256
  %vm1868 = vcmp.lt.s32.totalorder %v1865, 128
  %vm1869 = vcmp.lt.s32.totalorder %v1866, 128
  %vm1870 = vcmp.lt.s32.totalorder %v1867, 128
  %vm1871 = vcmp.lt.s32.totalorder %v1865, 256
  %vm1872 = vcmp.lt.s32.totalorder %v1866, 256
  %vm1873 = vcmp.lt.s32.totalorder %v1867, 256
  %v1874 = vsel %vm1871, 5, 4
  %v1875 = vsel %vm1872, 5, 4
  %v1876 = vsel %vm1873, 5, 4
  %v1877 = vsel %vm1868, 6, %v1874
  %v1878 = vsel %vm1869, 6, %v1875
  %v1879 = vsel %vm1870, 6, %v1876
  %vm1880 = vcmp.lt.s32.totalorder %v1863, %v1877
  %vm1881 = vcmp.lt.s32.totalorder %v1863, %v1878
  %vm1882 = vcmp.lt.s32.totalorder %v1863, %v1879
  %v1883 = vsel %vm1880, 1, 0
  %v1884 = vsel %vm1881, 1, 0
  %v1885 = vsel %vm1882, 1, 0
  %vm1886 = vcmp.eq.s32.totalorder %v1883, 1
  %vm1887 = vcmp.eq.s32.totalorder %v1884, 1
  %vm1888 = vcmp.eq.s32.totalorder %v1885, 1
  %v1889 = vsel %vm1886, %v1838, 0.0
  %v1890 = vsel %vm1887, %v1839, 0.0
  %v1891 = vsel %vm1888, %v1840, 0.0
  %v1892 = vsel %vm1886, %v1841, 0.0
  %v1893 = vsel %vm1887, %v1842, 0.0
  %v1894 = vsel %vm1888, %v1843, 0.0
  %v1895 = vsel %vm1886, %v1844, 0.0
  %v1896 = vsel %vm1887, %v1845, 0.0
  %v1897 = vsel %vm1888, %v1846, 0.0
  %v1898 = vsel %vm1886, %v1847, 0.0
  %v1899 = vsel %vm1887, %v1848, 0.0
  %v1900 = vsel %vm1888, %v1849, 0.0
  %v1901 = vsel %vm1886, %v1850, 0.0
  %v1902 = vsel %vm1887, %v1851, 0.0
  %v1903 = vsel %vm1888, %v1852, 0.0
  %v1904 = vsel %vm1886, %v1853, 0.0
  %v1905 = vsel %vm1887, %v1854, 0.0
  %v1906 = vsel %vm1888, %v1855, 0.0
  %v1907 = vsel %vm1886, %v1856, 0.0
  %v1908 = vsel %vm1887, %v1857, 0.0
  %v1909 = vsel %vm1888, %v1858, 0.0
  %v1910 = vsel %vm1886, %v1859, 0.0
  %v1911 = vsel %vm1887, %v1860, 0.0
  %v1912 = vsel %vm1888, %v1861, 0.0
  %v1913 = vrot.slane %v1889, 4
  %v1914 = vmax.f32 %v1889, %v1913
  %v1915 = vrot.slane %v1914, 2
  %v1916 = vmax.f32 %v1914, %v1915
  %v1917 = vrot.slane %v1916, 1
  %v1918 = vmax.f32 %v1916, %v1917
  %v1919 = vrot.slane %v1890, 4
  %v1920 = vmax.f32 %v1890, %v1919
  %v1921 = vrot.slane %v1920, 2
  %v1922 = vmax.f32 %v1920, %v1921
  %v1923 = vrot.slane %v1922, 1
  %v1924 = vmax.f32 %v1922, %v1923
  %v1925 = vrot.slane %v1891, 4
  %v1926 = vmax.f32 %v1891, %v1925
  %v1927 = vrot.slane %v1926, 2
  %v1928 = vmax.f32 %v1926, %v1927
  %v1929 = vrot.slane %v1928, 1
  %v1930 = vmax.f32 %v1928, %v1929
  %v1931 = vrot.slane %v1892, 4
  %v1932 = vmax.f32 %v1892, %v1931
  %v1933 = vrot.slane %v1932, 2
  %v1934 = vmax.f32 %v1932, %v1933
  %v1935 = vrot.slane %v1934, 1
  %v1936 = vmax.f32 %v1934, %v1935
  %v1937 = vrot.slane %v1893, 4
  %v1938 = vmax.f32 %v1893, %v1937
  %v1939 = vrot.slane %v1938, 2
  %v1940 = vmax.f32 %v1938, %v1939
  %v1941 = vrot.slane %v1940, 1
  %v1942 = vmax.f32 %v1940, %v1941
  %v1943 = vrot.slane %v1894, 4
  %v1944 = vmax.f32 %v1894, %v1943
  %v1945 = vrot.slane %v1944, 2
  %v1946 = vmax.f32 %v1944, %v1945
  %v1947 = vrot.slane %v1946, 1
  %v1948 = vmax.f32 %v1946, %v1947
  %v1949 = vrot.slane %v1895, 4
  %v1950 = vmax.f32 %v1895, %v1949
  %v1951 = vrot.slane %v1950, 2
  %v1952 = vmax.f32 %v1950, %v1951
  %v1953 = vrot.slane %v1952, 1
  %v1954 = vmax.f32 %v1952, %v1953
  %v1955 = vrot.slane %v1896, 4
  %v1956 = vmax.f32 %v1896, %v1955
  %v1957 = vrot.slane %v1956, 2
  %v1958 = vmax.f32 %v1956, %v1957
  %v1959 = vrot.slane %v1958, 1
  %v1960 = vmax.f32 %v1958, %v1959
  %v1961 = vrot.slane %v1897, 4
  %v1962 = vmax.f32 %v1897, %v1961
  %v1963 = vrot.slane %v1962, 2
  %v1964 = vmax.f32 %v1962, %v1963
  %v1965 = vrot.slane %v1964, 1
  %v1966 = vmax.f32 %v1964, %v1965
  %v1967 = vrot.slane %v1898, 4
  %v1968 = vmax.f32 %v1898, %v1967
  %v1969 = vrot.slane %v1968, 2
  %v1970 = vmax.f32 %v1968, %v1969
  %v1971 = vrot.slane %v1970, 1
  %v1972 = vmax.f32 %v1970, %v1971
  %v1973 = vrot.slane %v1899, 4
  %v1974 = vmax.f32 %v1899, %v1973
  %v1975 = vrot.slane %v1974, 2
  %v1976 = vmax.f32 %v1974, %v1975
  %v1977 = vrot.slane %v1976, 1
  %v1978 = vmax.f32 %v1976, %v1977
  %v1979 = vrot.slane %v1900, 4
  %v1980 = vmax.f32 %v1900, %v1979
  %v1981 = vrot.slane %v1980, 2
  %v1982 = vmax.f32 %v1980, %v1981
  %v1983 = vrot.slane %v1982, 1
  %v1984 = vmax.f32 %v1982, %v1983
  %v1985 = vrot.slane %v1901, 4
  %v1986 = vmax.f32 %v1901, %v1985
  %v1987 = vrot.slane %v1986, 2
  %v1988 = vmax.f32 %v1986, %v1987
  %v1989 = vrot.slane %v1988, 1
  %v1990 = vmax.f32 %v1988, %v1989
  %v1991 = vrot.slane %v1902, 4
  %v1992 = vmax.f32 %v1902, %v1991
  %v1993 = vrot.slane %v1992, 2
  %v1994 = vmax.f32 %v1992, %v1993
  %v1995 = vrot.slane %v1994, 1
  %v1996 = vmax.f32 %v1994, %v1995
  %v1997 = vrot.slane %v1903, 4
  %v1998 = vmax.f32 %v1903, %v1997
  %v1999 = vrot.slane %v1998, 2
  %v2000 = vmax.f32 %v1998, %v1999
  %v2001 = vrot.slane %v2000, 1
  %v2002 = vmax.f32 %v2000, %v2001
  %v2003 = vrot.slane %v1904, 4
  %v2004 = vmax.f32 %v1904, %v2003
  %v2005 = vrot.slane %v2004, 2
  %v2006 = vmax.f32 %v2004, %v2005
  %v2007 = vrot.slane %v2006, 1
  %v2008 = vmax.f32 %v2006, %v2007
  %v2009 = vrot.slane %v1905, 4
  %v2010 = vmax.f32 %v1905, %v2009
  %v2011 = vrot.slane %v2010, 2
  %v2012 = vmax.f32 %v2010, %v2011
  %v2013 = vrot.slane %v2012, 1
  %v2014 = vmax.f32 %v2012, %v2013
  %v2015 = vrot.slane %v1906, 4
  %v2016 = vmax.f32 %v1906, %v2015
  %v2017 = vrot.slane %v2016, 2
  %v2018 = vmax.f32 %v2016, %v2017
  %v2019 = vrot.slane %v2018, 1
  %v2020 = vmax.f32 %v2018, %v2019
  %v2021 = vrot.slane %v1907, 4
  %v2022 = vmax.f32 %v1907, %v2021
  %v2023 = vrot.slane %v2022, 2
  %v2024 = vmax.f32 %v2022, %v2023
  %v2025 = vrot.slane %v2024, 1
  %v2026 = vmax.f32 %v2024, %v2025
  %v2027 = vrot.slane %v1908, 4
  %v2028 = vmax.f32 %v1908, %v2027
  %v2029 = vrot.slane %v2028, 2
  %v2030 = vmax.f32 %v2028, %v2029
  %v2031 = vrot.slane %v2030, 1
  %v2032 = vmax.f32 %v2030, %v2031
  %v2033 = vrot.slane %v1909, 4
  %v2034 = vmax.f32 %v1909, %v2033
  %v2035 = vrot.slane %v2034, 2
  %v2036 = vmax.f32 %v2034, %v2035
  %v2037 = vrot.slane %v2036, 1
  %v2038 = vmax.f32 %v2036, %v2037
  %v2039 = vrot.slane %v1910, 4
  %v2040 = vmax.f32 %v1910, %v2039
  %v2041 = vrot.slane %v2040, 2
  %v2042 = vmax.f32 %v2040, %v2041
  %v2043 = vrot.slane %v2042, 1
  %v2044 = vmax.f32 %v2042, %v2043
  %v2045 = vrot.slane %v1911, 4
  %v2046 = vmax.f32 %v1911, %v2045
  %v2047 = vrot.slane %v2046, 2
  %v2048 = vmax.f32 %v2046, %v2047
  %v2049 = vrot.slane %v2048, 1
  %v2050 = vmax.f32 %v2048, %v2049
  %v2051 = vrot.slane %v1912, 4
  %v2052 = vmax.f32 %v1912, %v2051
  %v2053 = vrot.slane %v2052, 2
  %v2054 = vmax.f32 %v2052, %v2053
  %v2055 = vrot.slane %v2054, 1
  %v2056 = vmax.f32 %v2054, %v2055
  %v2057 = vld [vmem:[%s3] sm:$0x7]
  %v2059 = vlaneseq
  %v2060 = vshrl.u32 %v2059, 7
  %v2061 = vsub.s32 0, %v2060
  %v2062 = vrot.slane %v2057, %v2061
  %v2063 = vlaneseq
  %v2064 = vshrl.u32 %v2063, 7
  %v2065 = vsub.s32 1, %v2064
  %v2066 = vrot.slane %v2057, %v2065
  %v2067 = vlaneseq
  %v2068 = vshrl.u32 %v2067, 7
  %v2069 = vsub.s32 2, %v2068
  %v2070 = vrot.slane %v2057, %v2069
  %v2074 = vmul.f32 %v1918, %v2062
  %v2075 = vmul.f32 %v1924, %v2066
  %v2076 = vmul.f32 %v1930, %v2070
  %v2077 = vmul.f32 %v1936, %v2062
  %v2078 = vmul.f32 %v1942, %v2066
  %v2079 = vmul.f32 %v1948, %v2070
  %v2080 = vmul.f32 %v1954, %v2062
  %v2081 = vmul.f32 %v1960, %v2066
  %v2082 = vmul.f32 %v1966, %v2070
  %v2083 = vmul.f32 %v1972, %v2062
  %v2084 = vmul.f32 %v1978, %v2066
  %v2085 = vmul.f32 %v1984, %v2070
  %v2086 = vmul.f32 %v1990, %v2062
  %v2087 = vmul.f32 %v1996, %v2066
  %v2088 = vmul.f32 %v2002, %v2070
  %v2089 = vmul.f32 %v2008, %v2062
  %v2090 = vmul.f32 %v2014, %v2066
  %v2091 = vmul.f32 %v2020, %v2070
  %v2092 = vmul.f32 %v2026, %v2062
  %v2093 = vmul.f32 %v2032, %v2066
  %v2094 = vmul.f32 %v2038, %v2070
  %v2095 = vmul.f32 %v2044, %v2062
  %v2096 = vmul.f32 %v2050, %v2066
  %v2097 = vmul.f32 %v2056, %v2070
  %v2122 = vrot.slane %v2077, 7
  %vm2123 = vcmask 1041409
  %v2124 = vsel %vm2123, %v2122, %v2074
  %v2125 = vrot.slane %v2080, 6
  %vm2126 = vcmask 1042434
  %v2127 = vsel %vm2126, %v2125, %v2124
  %v2128 = vrot.slane %v2083, 5
  %vm2129 = vcmask 1043459
  %v2130 = vsel %vm2129, %v2128, %v2127
  %v2131 = vrot.slane %v2086, 4
  %vm2132 = vcmask 1044484
  %v2133 = vsel %vm2132, %v2131, %v2130
  %v2134 = vrot.slane %v2089, 3
  %vm2135 = vcmask 1045509
  %v2136 = vsel %vm2135, %v2134, %v2133
  %v2137 = vrot.slane %v2092, 2
  %vm2138 = vcmask 1046534
  %v2139 = vsel %vm2138, %v2137, %v2136
  %v2140 = vrot.slane %v2095, 1
  %vm2141 = vcmask 1047559
  %v2142 = vsel %vm2141, %v2140, %v2139
  %v2143 = vrot.slane %v2078, 7
  %v2144 = vsel %vm2123, %v2143, %v2075
  %v2145 = vrot.slane %v2081, 6
  %v2146 = vsel %vm2126, %v2145, %v2144
  %v2147 = vrot.slane %v2084, 5
  %v2148 = vsel %vm2129, %v2147, %v2146
  %v2149 = vrot.slane %v2087, 4
  %v2150 = vsel %vm2132, %v2149, %v2148
  %v2151 = vrot.slane %v2090, 3
  %v2152 = vsel %vm2135, %v2151, %v2150
  %v2153 = vrot.slane %v2093, 2
  %v2154 = vsel %vm2138, %v2153, %v2152
  %v2155 = vrot.slane %v2096, 1
  %v2156 = vsel %vm2141, %v2155, %v2154
  %v2157 = vrot.slane %v2079, 7
  %v2158 = vsel %vm2123, %v2157, %v2076
  %v2159 = vrot.slane %v2082, 6
  %v2160 = vsel %vm2126, %v2159, %v2158
  %v2161 = vrot.slane %v2085, 5
  %v2162 = vsel %vm2129, %v2161, %v2160
  %v2163 = vrot.slane %v2088, 4
  %v2164 = vsel %vm2132, %v2163, %v2162
  %v2165 = vrot.slane %v2091, 3
  %v2166 = vsel %vm2135, %v2165, %v2164
  %v2167 = vrot.slane %v2094, 2
  %v2168 = vsel %vm2138, %v2167, %v2166
  %v2169 = vrot.slane %v2097, 1
  %v2170 = vsel %vm2141, %v2169, %v2168
  %v2174 = vadd.f32 %v2142, %v2156
  %v2175 = vadd.f32 %v2174, %v2170
  %2176 = vadd.xlane.f32.xlu0 %v2175
  %v2177 = vpop.xlane.xlu0 %2176
  %s2178 = sld [smem:[#allocation3]]
  %v2179 = vstv %s2178
  %v2180 = vadd.f32 %v2177, %v2179
  %v2181 = vxor.u32 %v2180, 2147483648
  %v2182 = vmul.f32 %v2181, 1.442695
  %v2183 = vpow.pop %v2182
  %v2184 = vadd.f32 %v2183, 1.0
  %v2185 = vrcp.pop %v2184
  %v2186 = vmul.f32 1.0, %v2185
  %vm2187 = vcmp.eq.s32.totalorder %v1865, 0
  %vm2188 = vcmp.eq.s32.totalorder %v1865, 1
  %v2189 = vsub.f32 1.0, %v2186
  %v2190 = vsel %vm2188, %v2189, 0.0
  %v2191 = vsel %vm2187, %v2186, %v2190
  %2192 = vst [vmem:[%s5] sm:$0xff] %v2191
  // Predicated region
  $region22: #{_lambda_.1} parent=0 // pred_check
    _
  $region23: #{_lambda_.1} parent=0 // pred_check_branch
    %2194 = sbr.rel (0) target = $region25
  $region24: #{_lambda_.1} parent=0 // pred_region
    _
  $region25: #{_lambda_.1} parent=0 // pred_fallthru
    _
  // Predicated region
  $region26: #{_lambda_.1} parent=0 // pred_check
    _
  $region27: #{_lambda_.1} parent=0 // pred_check_branch
    %2196 = sbr.rel (0) target = $region29
  $region28: #{_lambda_.1} parent=0 // pred_region
    _
  $region29: #{_lambda_.1} parent=0 // pred_fallthru
    _

</llo_original>
